<compile_context>
chip_gen: v7x
topology: tpu7x:2x2x1
jax: 0.10.0
libtpu: 0.0.40
codegen_flags: <defaults>
</compile_context>

<pallas_src>
import functools

import numpy as np
import jax
import jax.numpy as jnp
from jax import lax
from jax.experimental import pallas as pl
from jax.experimental.pallas import tpu as pltpu


def _const_layout(bl):
    """Row offsets of the packed f32 constants slab (all multiples of 8 so the
    in-kernel sublane slices stay (8,128)-tile aligned)."""
    lay = {"lnw": 0, "lnb": 8, "bout": 16, "mkeep": 24, "msp": 32, "cos": 40}
    lay["sin"] = lay["cos"] + bl
    lay["m1"] = lay["sin"] + bl
    lay["m2"] = lay["m1"] + bl
    lay["rows"] = lay["m2"] + bl
    return lay


def block_kernel(x_ref, const_ref, w_ref, wp_ref, wop_ref,
                 tril_ref, cb_ref, hm_ref, o_ref, *, heads, head_dim):
    f32 = jnp.float32
    BL, D = x_ref.shape                       # (batch*seq, hidden)
    H = heads
    lay = _const_layout(BL)

    x = x_ref[...].astype(f32)

    ln_w = const_ref[lay["lnw"]:lay["lnw"] + 1]          # (1, D)
    ln_b = const_ref[lay["lnb"]:lay["lnb"] + 1]
    b_out = const_ref[lay["bout"]:lay["bout"] + 1]
    m_keep = const_ref[lay["mkeep"]:lay["mkeep"] + 1]
    m_sp = const_ref[lay["msp"]:lay["msp"] + 1]
    cos = const_ref[lay["cos"]:lay["cos"] + BL]          # (BL, D)
    sin = const_ref[lay["sin"]:lay["sin"] + BL]
    m_s1 = const_ref[lay["m1"]:lay["m1"] + BL]
    m_s2 = const_ref[lay["m2"]:lay["m2"] + BL]

    # ---------------- LayerNorm: independent sum / sum-of-squares reductions ------
    inv_d = 1.0 / D
    mean = jnp.sum(x, axis=-1, keepdims=True) * inv_d
    mean_sq = jnp.sum(x * x, axis=-1, keepdims=True) * inv_d
    var = mean_sq - mean * mean
    x = (x - mean) * lax.rsqrt(var + 1e-5)
    x = x * ln_w + ln_b

    # ---------------- time_pool: SplitParallel([5,1,1,1]) ----------------
    # SoftPrefixMax: logcumsumexp(5x)/5 via a per-batch block-diagonal tril matmul.
    # TODO(synk): stabilized with the global per-column max rather than a running
    # prefix max; fine for LN-scaled inputs, less robust than true cumlogsumexp.
    y5 = x * 5.0
    mcol = jnp.max(y5, axis=0, keepdims=True)
    e = jnp.exp(y5 - mcol)
    csum = jnp.dot(tril_ref[...], e, preferred_element_type=f32)
    soft_prefix = (jnp.log(csum) + mcol) * 0.2

    # Token shifts by 1 / 2: XLU rolls along the (batch*seq) sublane axis; the
    # precomputed masks zero both the non-shift columns and the rows that would
    # otherwise wrap across a batch boundary.
    x = (x * m_keep + soft_prefix * m_sp
         + pltpu.roll(x, 1, 0) * m_s1 + pltpu.roll(x, 2, 0) * m_s2)

    # ---------------- projections (8-aligned sublane slices of the weight slab) ---
    w_q = w_ref[0:D]
    w_k = w_ref[D:2 * D]
    w_v = w_ref[2 * D:3 * D]
    rot = w_ref[3 * D:4 * D]
    w_oo = w_ref[4 * D:5 * D]

    q = jnp.dot(x, w_q, preferred_element_type=f32)
    k = jnp.dot(x, w_k, preferred_element_type=f32)
    v = jnp.dot(x, w_v, preferred_element_type=f32)
    # FF branch: bf16 MXU operands (single pass), f32 accumulation.
    p = jnp.dot(x.astype(wp_ref.dtype), wp_ref[...], preferred_element_type=f32)

    # ---------------- rotary embedding: two independent small dots ----------------
    q = q * cos + jnp.dot(q, rot, preferred_element_type=f32) * sin
    k = k * cos + jnp.dot(k, rot, preferred_element_type=f32) * sin

    # ---------------- causal attention, (head, batch) folded block-diagonally -----
    # Rows of kb/vb are indexed (h, b, j); scores are one full 128-lane tile
    # (BL, H*BL).  The NT dot_general feeds k transposed to the MXU directly.
    hm = hm_ref[...]                                        # (H*BL, D)
    kb = jnp.concatenate([k] * H, axis=0) * hm
    vb = jnp.concatenate([v] * H, axis=0) * hm
    s = lax.dot_general(q, kb, (((1,), (1,)), ((), ())),
                        preferred_element_type=f32)         # (BL, H*BL)
    s = s * (float(head_dim) ** -0.5) + cb_ref[...]         # causal + same-batch bias
    m = jnp.max(s, axis=-1, keepdims=True)                  # shared row max (exact)
    es = jnp.exp(s - m)                                     # masked entries -> 0
    o_un = jnp.dot(es, vb, preferred_element_type=f32)      # (BL, D) heads concatenated
    den = jnp.dot(es, hm, preferred_element_type=f32)       # per-head softmax denoms
    r = pl.reciprocal(den, approx=True)                     # EUP
    r = r * (2.0 - den * r)                                 # one Newton step -> f32-exact
    o = o_un * r

    # ---------------- gelu on the FF branch (kept f32 on every chip) --------------
    # TODO(synk): exact erf approximated with A&S 7.1.26 poly (|err| < 1.5e-7).
    z = p * 0.7071067811865476
    az = jnp.abs(z)
    sgn = jnp.where(z >= 0.0, 1.0, -1.0)
    t = 1.0 / (1.0 + 0.3275911 * az)
    poly = ((((1.061405429 * t - 1.453152027) * t + 1.421413741) * t
             - 0.284496736) * t + 0.254829592) * t
    erf_z = sgn * (1.0 - poly * jnp.exp(-az * az))
    p = 0.5 * p * (1.0 + erf_z)

    # ---------------- out_proj: attention half f32, FF half bf16 ------------------
    out = (jnp.dot(o, w_oo, preferred_element_type=f32)
           + jnp.dot(p.astype(wop_ref.dtype), wop_ref[...], preferred_element_type=f32)
           + b_out)
    o_ref[...] = out.astype(o_ref.dtype)


def block_forward(x, params, heads, head_dim, expansion_factor=4):
    B, L, D = x.shape
    assert D == heads * head_dim
    BL = B * L
    HBL = heads * BL
    assert BL % 8 == 0, "sublane-aligned const-slab layout assumes B*L % 8 == 0"
    stride = D // 8

    # ---- split the fused projections into lane-aligned column blocks ----
    w_in_t = params["w_in_t"]                      # (D, (3+E)*D)
    w_q, w_k, w_v = w_in_t[:, :D], w_in_t[:, D:2 * D], w_in_t[:, 2 * D:3 * D]
    w_p = w_in_t[:, 3 * D:]                        # (D, E*D)
    w_out_o = params["w_out_t"][:D, :]             # (D, D)
    w_out_p = params["w_out_t"][D:, :]             # (E*D, D)

    # One sublane-stacked f32 weight slab: W_q | W_k | W_v | rotate_half | W_out_o.
    w_slab = jnp.concatenate([w_q, w_k, w_v, params["rot"], w_out_o], axis=0)

    # FF weights shipped as bf16 (single-pass MXU operands, half the DMA bytes).
    w_p_bf = w_p.astype(jnp.bfloat16)
    w_out_p_bf = w_out_p.astype(jnp.bfloat16)

    # ---- packed constants slab (in production this is built once, not per call) --
    lay = _const_layout(BL)
    col = np.arange(D)
    li = (np.arange(BL) % L)[:, None]              # seq position within each batch row
    m_keep = (col < 5 * stride).astype(np.float32)                        # (D,)
    m_sp = ((col >= 5 * stride) & (col < 6 * stride)).astype(np.float32)  # (D,)
    m1 = (((col >= 6 * stride) & (col < 7 * stride))[None, :]
          & (li >= 1)).astype(np.float32)                                 # (BL, D)
    m2 = ((col >= 7 * stride)[None, :] & (li >= 2)).astype(np.float32)    # (BL, D)

    const = jnp.zeros((lay["rows"], D), jnp.float32)
    const = const.at[lay["lnw"]].set(params["ln_w"][0])
    const = const.at[lay["lnb"]].set(params["ln_b"][0])
    const = const.at[lay["bout"]].set(params["b_out"][0])
    const = const.at[lay["mkeep"]].set(jnp.asarray(m_keep))
    const = const.at[lay["msp"]].set(jnp.asarray(m_sp))
    const = const.at[lay["cos"]:lay["cos"] + BL].set(jnp.tile(params["cos"], (B, 1)))
    const = const.at[lay["sin"]:lay["sin"] + BL].set(jnp.tile(params["sin"], (B, 1)))
    const = const.at[lay["m1"]:lay["m1"] + BL].set(jnp.asarray(m1))
    const = const.at[lay["m2"]:lay["m2"] + BL].set(jnp.asarray(m2))

    # Per-batch block-diagonal tril for the soft-prefix cumulative sum.
    tril = np.kron(np.eye(B, dtype=np.float32),
                   np.tril(np.ones((L, L), np.float32)))                  # (BL, BL)

    # Causal + same-batch bias for the (head, batch)-folded scores.
    # Score column index = h*(B*L) + b'*L + j.
    rb, ri = np.arange(BL) // L, np.arange(BL) % L
    cidx = np.arange(HBL)
    cb_b, cj = (cidx % BL) // L, cidx % L
    valid = (rb[:, None] == cb_b[None, :]) & (cj[None, :] <= ri[:, None])
    cbias = np.where(valid, 0.0, -1e10).astype(np.float32)                # (BL, HBL)

    # Head mask shared by kb, vb and the per-head softmax denominators.
    hmask = ((np.arange(HBL) // BL)[:, None]
             == (np.arange(D) // head_dim)[None, :]).astype(np.float32)   # (HBL, D)

    kernel = functools.partial(block_kernel, heads=heads, head_dim=head_dim)
    # Grid-less call: the whole (tiny) problem lives in one invocation; for large
    # B one would reintroduce a grid over batch chunks marked "parallel".
    out = pl.pallas_call(
        kernel,
        out_shape=jax.ShapeDtypeStruct((BL, D), jnp.float32),
    )(x.reshape(BL, D), const, w_slab, w_p_bf, w_out_p_bf,
      jnp.asarray(tril), jnp.asarray(cbias), jnp.asarray(hmask))
    return out.reshape(B, L, D)


def block_ref(x, params, heads, head_dim, ff_bf16=False):
    """Pure-JAX reference matching the PyTorch forward.  With ff_bf16=True the
    two FF matmuls use the same bf16 operand rounding as the kernel (everything
    else exact f32), giving a tight comparison target."""
    B, L, D = x.shape
    stride = D // 8
    mean = x.mean(-1, keepdims=True)
    var = ((x - mean) ** 2).mean(-1, keepdims=True)
    h = (x - mean) / jnp.sqrt(var + 1e-5)
    h = h * params["ln_w"][0] + params["ln_b"][0]
    seg1 = lax.cumlogsumexp(h[:, :, 5 * stride:6 * stride] * 5.0, axis=1) / 5.0
    seg2 = jnp.pad(h[:, :, 6 * stride:7 * stride], ((0, 0), (1, 0), (0, 0)))[:, :L, :]
    seg3 = jnp.pad(h[:, :, 7 * stride:8 * stride], ((0, 0), (2, 0), (0, 0)))[:, :L, :]
    h = jnp.concatenate([h[:, :, :5 * stride], seg1, seg2, seg3], axis=-1)

    w_in = params["w_in_t"]
    qkv = h @ w_in[:, :3 * D]
    q, k, v = jnp.split(qkv, 3, axis=-1)
    if ff_bf16:
        p = jnp.dot(h.astype(jnp.bfloat16), w_in[:, 3 * D:].astype(jnp.bfloat16),
                    preferred_element_type=jnp.float32)
    else:
        p = h @ w_in[:, 3 * D:]

    emb = params["emb"]                                      # (L, head_dim)
    cos4 = jnp.cos(emb)[None, :, None, :]
    sin4 = jnp.sin(emb)[None, :, None, :]

    def rotary4(t):
        t4 = t.reshape(B, L, heads, head_dim)
        t1, t2 = jnp.split(t4, 2, axis=-1)
        return t4 * cos4 + jnp.concatenate([-t2, t1], axis=-1) * sin4

    q4, k4 = rotary4(q), rotary4(k)
    v4 = v.reshape(B, L, heads, head_dim)
    a = jnp.einsum('bihd,bjhd->bhij', q4, k4) * head_dim ** -0.5
    mask = jnp.tril(jnp.ones((L, L), jnp.float32))
    a = a + (-1e10 * (1.0 - mask))[None, None]
    a = jax.nn.softmax(a, axis=-1)
    o = jnp.einsum('bhij,bjhd->bihd', a, v4).reshape(B, L, D)
    p = jax.nn.gelu(p, approximate=False)

    w_out = params["w_out_t"]
    if ff_bf16:
        ff = jnp.dot(p.astype(jnp.bfloat16), w_out[D:].astype(jnp.bfloat16),
                     preferred_element_type=jnp.float32)
    else:
        ff = p @ w_out[D:]
    return o @ w_out[:D] + ff + params["b_out"][0]


if __name__ == "__main__":
    # Config: depth=2, heads=4, head_dim=16, max_seq_len=16, expansion_factor=4
    heads, head_dim, expansion = 4, 16, 4
    D = heads * head_dim          # 64
    B, L = 2, 16                  # rotary/causal buffers assume seq == max_seq_len

    key = jax.random.PRNGKey(0)
    ks = jax.random.split(key, 6)
    x = jax.random.normal(ks[0], (B, L, D), jnp.float32)

    # Deterministic synthetic parameters (shapes follow Block.__init__).
    ln_w = 1.0 + 0.1 * jax.random.normal(ks[1], (1, D), jnp.float32)
    ln_b = 0.1 * jax.random.normal(ks[2], (1, D), jnp.float32)
    w_in_t = 0.1 * jax.random.normal(ks[3], (D, (3 + expansion) * D), jnp.float32)
    w_out_t = 0.05 * jax.random.normal(ks[4], ((1 + expansion) * D, D), jnp.float32)
    b_out = 0.1 * jax.random.normal(ks[5], (1, D), jnp.float32)

    # Rotary tables (same construction as RotaryEmbedding.__init__).
    inv_freq = 1.0 / (10000.0 ** (np.arange(0, head_dim, 2, dtype=np.float32) / head_dim))
    t = np.arange(L, dtype=np.float32)
    freqs = np.einsum('i,j->ij', t, inv_freq)
    emb = np.concatenate([freqs, freqs], axis=-1)            # (L, head_dim)
    cos_flat = jnp.asarray(np.tile(np.cos(emb), (1, heads))) # (L, D)
    sin_flat = jnp.asarray(np.tile(np.sin(emb), (1, heads)))

    # rotate_half as a right-multiplied permutation/sign matrix on flattened heads.
    R = np.zeros((D, D), np.float32)
    half = head_dim // 2
    for h in range(heads):
        for d in range(half):
            R[h * head_dim + d + half, h * head_dim + d] = -1.0
            R[h * head_dim + d, h * head_dim + d + half] = 1.0

    params = dict(ln_w=ln_w, ln_b=ln_b, w_in_t=w_in_t, w_out_t=w_out_t,
                  b_out=b_out, cos=cos_flat, sin=sin_flat,
                  rot=jnp.asarray(R), emb=jnp.asarray(emb))

    out = block_forward(x, params, heads, head_dim, expansion)
    out = jax.block_until_ready(out)
    assert out.shape == (B, L, D)

    # Tight check against a reference that applies the same bf16 rounding at the
    # two FF MXU operand boundaries (everything else f32/exact).
    ref_bf16ff = block_ref(x, params, heads, head_dim, ff_bf16=True)
    np.testing.assert_allclose(np.asarray(out), np.asarray(ref_bf16ff),
                               atol=2e-3, rtol=2e-3)
    # Sanity check against the fully-f32 reference: the bf16 FF operands only
    # introduce ~2^-8 operand rounding, far below this loose bound.
    ref_f32 = block_ref(x, params, heads, head_dim, ff_bf16=False)
    np.testing.assert_allclose(np.asarray(out), np.asarray(ref_f32),
                               atol=5e-2, rtol=5e-2)

    print("KERNEL_OK")
</pallas_src>

<mosaic_0001>
module attributes {stable_mosaic.version = 11 : i64} {
  func.func @block_kernel(%arg0: memref<32x64xf32, #tpu.memory_space<vmem>>, %arg1: memref<168x64xf32, #tpu.memory_space<vmem>>, %arg2: memref<320x64xf32, #tpu.memory_space<vmem>>, %arg3: memref<64x256xbf16, #tpu.memory_space<vmem>>, %arg4: memref<256x64xbf16, #tpu.memory_space<vmem>>, %arg5: memref<32x32xf32, #tpu.memory_space<vmem>>, %arg6: memref<32x128xf32, #tpu.memory_space<vmem>>, %arg7: memref<128x64xf32, #tpu.memory_space<vmem>>, %arg8: memref<32x64xf32, #tpu.memory_space<vmem>>) attributes {dimension_semantics = [], scalar_prefetch = 0 : i64, scratch_operands = 0 : i64, tpu.core_type = #tpu.core_type<tc>} {
    %c0 = arith.constant 0 : index
    %c0_0 = arith.constant 0 : index
    %0 = vector.load %arg0[%c0, %c0_0] : memref<32x64xf32, #tpu.memory_space<vmem>>, vector<32x64xf32>
    %c0_1 = arith.constant 0 : index
    %c0_2 = arith.constant 0 : index
    %1 = vector.load %arg1[%c0_1, %c0_2] : memref<168x64xf32, #tpu.memory_space<vmem>>, vector<1x64xf32>
    %c8 = arith.constant 8 : index
    %c0_3 = arith.constant 0 : index
    %2 = vector.load %arg1[%c8, %c0_3] : memref<168x64xf32, #tpu.memory_space<vmem>>, vector<1x64xf32>
    %c16 = arith.constant 16 : index
    %c0_4 = arith.constant 0 : index
    %3 = vector.load %arg1[%c16, %c0_4] : memref<168x64xf32, #tpu.memory_space<vmem>>, vector<1x64xf32>
    %c24 = arith.constant 24 : index
    %c0_5 = arith.constant 0 : index
    %4 = vector.load %arg1[%c24, %c0_5] : memref<168x64xf32, #tpu.memory_space<vmem>>, vector<1x64xf32>
    %c32 = arith.constant 32 : index
    %c0_6 = arith.constant 0 : index
    %5 = vector.load %arg1[%c32, %c0_6] : memref<168x64xf32, #tpu.memory_space<vmem>>, vector<1x64xf32>
    %c40 = arith.constant 40 : index
    %c0_7 = arith.constant 0 : index
    %6 = vector.load %arg1[%c40, %c0_7] : memref<168x64xf32, #tpu.memory_space<vmem>>, vector<32x64xf32>
    %c72 = arith.constant 72 : index
    %c0_8 = arith.constant 0 : index
    %7 = vector.load %arg1[%c72, %c0_8] : memref<168x64xf32, #tpu.memory_space<vmem>>, vector<32x64xf32>
    %c104 = arith.constant 104 : index
    %c0_9 = arith.constant 0 : index
    %8 = vector.load %arg1[%c104, %c0_9] : memref<168x64xf32, #tpu.memory_space<vmem>>, vector<32x64xf32>
    %c136 = arith.constant 136 : index
    %c0_10 = arith.constant 0 : index
    %9 = vector.load %arg1[%c136, %c0_10] : memref<168x64xf32, #tpu.memory_space<vmem>>, vector<32x64xf32>
    %cst = arith.constant dense<0.000000e+00> : vector<32xf32>
    %10 = vector.multi_reduction <add>, %0, %cst [1] : vector<32x64xf32> to vector<32xf32>
    %11 = vector.shape_cast %10 : vector<32xf32> to vector<32x1xf32>
    %cst_11 = arith.constant 1.562500e-02 : f32
    %12 = vector.broadcast %cst_11 : f32 to vector<32x1xf32>
    %13 = arith.mulf %11, %12 : vector<32x1xf32>
    %14 = arith.mulf %0, %0 : vector<32x64xf32>
    %cst_12 = arith.constant dense<0.000000e+00> : vector<32xf32>
    %15 = vector.multi_reduction <add>, %14, %cst_12 [1] : vector<32x64xf32> to vector<32xf32>
    %16 = vector.shape_cast %15 : vector<32xf32> to vector<32x1xf32>
    %cst_13 = arith.constant 1.562500e-02 : f32
    %17 = vector.broadcast %cst_13 : f32 to vector<32x1xf32>
    %18 = arith.mulf %16, %17 : vector<32x1xf32>
    %19 = arith.mulf %13, %13 : vector<32x1xf32>
    %20 = arith.subf %18, %19 : vector<32x1xf32>
    %21 = vector.broadcast %13 : vector<32x1xf32> to vector<32x64xf32>
    %22 = arith.subf %0, %21 : vector<32x64xf32>
    %cst_14 = arith.constant 9.99999974E-6 : f32
    %23 = vector.broadcast %cst_14 : f32 to vector<32x1xf32>
    %24 = arith.addf %20, %23 : vector<32x1xf32>
    %25 = math.rsqrt %24 : vector<32x1xf32>
    %26 = vector.broadcast %25 : vector<32x1xf32> to vector<32x64xf32>
    %27 = arith.mulf %22, %26 : vector<32x64xf32>
    %28 = vector.broadcast %1 : vector<1x64xf32> to vector<32x64xf32>
    %29 = arith.mulf %27, %28 : vector<32x64xf32>
    %30 = vector.broadcast %2 : vector<1x64xf32> to vector<32x64xf32>
    %31 = arith.addf %29, %30 : vector<32x64xf32>
    %cst_15 = arith.constant 5.000000e+00 : f32
    %32 = vector.broadcast %cst_15 : f32 to vector<32x64xf32>
    %33 = arith.mulf %31, %32 : vector<32x64xf32>
    %cst_16 = arith.constant dense<0xFF800000> : vector<64xf32>
    %34 = vector.multi_reduction <maximumf>, %33, %cst_16 [0] : vector<32x64xf32> to vector<64xf32>
    %35 = vector.shape_cast %34 : vector<64xf32> to vector<1x64xf32>
    %36 = vector.broadcast %35 : vector<1x64xf32> to vector<32x64xf32>
    %37 = arith.subf %33, %36 : vector<32x64xf32>
    %38 = math.exp %37 : vector<32x64xf32>
    %c0_17 = arith.constant 0 : index
    %c0_18 = arith.constant 0 : index
    %39 = vector.load %arg5[%c0_17, %c0_18] : memref<32x32xf32, #tpu.memory_space<vmem>>, vector<32x32xf32>
    %cst_19 = arith.constant dense<0.000000e+00> : vector<32x64xf32>
    %40 = tpu.matmul %39, %38, %cst_19 {dimension_numbers = #tpu.dot_dimension_numbers<[1], [0], [0], [1], [0, 0, 1, 1], [], []>} : vector<32x32xf32>, vector<32x64xf32>, vector<32x64xf32> -> vector<32x64xf32>
    %41 = math.log %40 : vector<32x64xf32>
    %42 = vector.broadcast %35 : vector<1x64xf32> to vector<32x64xf32>
    %43 = arith.addf %41, %42 : vector<32x64xf32>
    %cst_20 = arith.constant 2.000000e-01 : f32
    %44 = vector.broadcast %cst_20 : f32 to vector<32x64xf32>
    %45 = arith.mulf %43, %44 : vector<32x64xf32>
    %46 = vector.broadcast %4 : vector<1x64xf32> to vector<32x64xf32>
    %47 = arith.mulf %31, %46 : vector<32x64xf32>
    %48 = vector.broadcast %5 : vector<1x64xf32> to vector<32x64xf32>
    %49 = arith.mulf %45, %48 : vector<32x64xf32>
    %50 = arith.addf %47, %49 : vector<32x64xf32>
    %c1_i32 = arith.constant 1 : i32
    %51 = tpu.dynamic_rotate %31 by %c1_i32 dim 0 : vector<32x64xf32>, i32 -> vector<32x64xf32>
    %52 = arith.mulf %51, %8 : vector<32x64xf32>
    %53 = arith.addf %50, %52 : vector<32x64xf32>
    %c2_i32 = arith.constant 2 : i32
    %54 = tpu.dynamic_rotate %31 by %c2_i32 dim 0 : vector<32x64xf32>, i32 -> vector<32x64xf32>
    %55 = arith.mulf %54, %9 : vector<32x64xf32>
    %56 = arith.addf %53, %55 : vector<32x64xf32>
    %c0_21 = arith.constant 0 : index
    %c0_22 = arith.constant 0 : index
    %57 = vector.load %arg2[%c0_21, %c0_22] : memref<320x64xf32, #tpu.memory_space<vmem>>, vector<64x64xf32>
    %c64 = arith.constant 64 : index
    %c0_23 = arith.constant 0 : index
    %58 = vector.load %arg2[%c64, %c0_23] : memref<320x64xf32, #tpu.memory_space<vmem>>, vector<64x64xf32>
    %c128 = arith.constant 128 : index
    %c0_24 = arith.constant 0 : index
    %59 = vector.load %arg2[%c128, %c0_24] : memref<320x64xf32, #tpu.memory_space<vmem>>, vector<64x64xf32>
    %c192 = arith.constant 192 : index
    %c0_25 = arith.constant 0 : index
    %60 = vector.load %arg2[%c192, %c0_25] : memref<320x64xf32, #tpu.memory_space<vmem>>, vector<64x64xf32>
    %c256 = arith.constant 256 : index
    %c0_26 = arith.constant 0 : index
    %61 = vector.load %arg2[%c256, %c0_26] : memref<320x64xf32, #tpu.memory_space<vmem>>, vector<64x64xf32>
    %cst_27 = arith.constant dense<0.000000e+00> : vector<32x64xf32>
    %62 = tpu.matmul %56, %57, %cst_27 {dimension_numbers = #tpu.dot_dimension_numbers<[1], [0], [0], [1], [0, 0, 1, 1], [], []>} : vector<32x64xf32>, vector<64x64xf32>, vector<32x64xf32> -> vector<32x64xf32>
    %cst_28 = arith.constant dense<0.000000e+00> : vector<32x64xf32>
    %63 = tpu.matmul %56, %58, %cst_28 {dimension_numbers = #tpu.dot_dimension_numbers<[1], [0], [0], [1], [0, 0, 1, 1], [], []>} : vector<32x64xf32>, vector<64x64xf32>, vector<32x64xf32> -> vector<32x64xf32>
    %cst_29 = arith.constant dense<0.000000e+00> : vector<32x64xf32>
    %64 = tpu.matmul %56, %59, %cst_29 {dimension_numbers = #tpu.dot_dimension_numbers<[1], [0], [0], [1], [0, 0, 1, 1], [], []>} : vector<32x64xf32>, vector<64x64xf32>, vector<32x64xf32> -> vector<32x64xf32>
    %65 = arith.truncf %56 : vector<32x64xf32> to vector<32x64xbf16>
    %c0_30 = arith.constant 0 : index
    %c0_31 = arith.constant 0 : index
    %66 = vector.load %arg3[%c0_30, %c0_31] : memref<64x256xbf16, #tpu.memory_space<vmem>>, vector<64x256xbf16>
    %cst_32 = arith.constant dense<0.000000e+00> : vector<32x256xf32>
    %67 = tpu.matmul %65, %66, %cst_32 {dimension_numbers = #tpu.dot_dimension_numbers<[1], [0], [0], [1], [0, 0, 1, 1], [], []>} : vector<32x64xbf16>, vector<64x256xbf16>, vector<32x256xf32> -> vector<32x256xf32>
    %68 = arith.mulf %62, %6 : vector<32x64xf32>
    %cst_33 = arith.constant dense<0.000000e+00> : vector<32x64xf32>
    %69 = tpu.matmul %62, %60, %cst_33 {dimension_numbers = #tpu.dot_dimension_numbers<[1], [0], [0], [1], [0, 0, 1, 1], [], []>} : vector<32x64xf32>, vector<64x64xf32>, vector<32x64xf32> -> vector<32x64xf32>
    %70 = arith.mulf %69, %7 : vector<32x64xf32>
    %71 = arith.addf %68, %70 : vector<32x64xf32>
    %72 = arith.mulf %63, %6 : vector<32x64xf32>
    %cst_34 = arith.constant dense<0.000000e+00> : vector<32x64xf32>
    %73 = tpu.matmul %63, %60, %cst_34 {dimension_numbers = #tpu.dot_dimension_numbers<[1], [0], [0], [1], [0, 0, 1, 1], [], []>} : vector<32x64xf32>, vector<64x64xf32>, vector<32x64xf32> -> vector<32x64xf32>
    %74 = arith.mulf %73, %7 : vector<32x64xf32>
    %75 = arith.addf %72, %74 : vector<32x64xf32>
    %c0_35 = arith.constant 0 : index
    %c0_36 = arith.constant 0 : index
    %76 = vector.load %arg7[%c0_35, %c0_36] : memref<128x64xf32, #tpu.memory_space<vmem>>, vector<128x64xf32>
    %77 = tpu.concatenate %75, %75, %75, %75 in 0 : vector<32x64xf32>, vector<32x64xf32>, vector<32x64xf32>, vector<32x64xf32> -> vector<128x64xf32>
    %78 = arith.mulf %77, %76 : vector<128x64xf32>
    %79 = tpu.concatenate %64, %64, %64, %64 in 0 : vector<32x64xf32>, vector<32x64xf32>, vector<32x64xf32>, vector<32x64xf32> -> vector<128x64xf32>
    %80 = arith.mulf %79, %76 : vector<128x64xf32>
    %cst_37 = arith.constant dense<0.000000e+00> : vector<32x128xf32>
    %81 = tpu.matmul %71, %78, %cst_37 {dimension_numbers = #tpu.dot_dimension_numbers<[1], [1], [0], [0], [0, 0, 1, 0], [], []>} : vector<32x64xf32>, vector<128x64xf32>, vector<32x128xf32> -> vector<32x128xf32>
    %cst_38 = arith.constant 2.500000e-01 : f32
    %82 = vector.broadcast %cst_38 : f32 to vector<32x128xf32>
    %83 = arith.mulf %81, %82 : vector<32x128xf32>
    %c0_39 = arith.constant 0 : index
    %c0_40 = arith.constant 0 : index
    %84 = vector.load %arg6[%c0_39, %c0_40] : memref<32x128xf32, #tpu.memory_space<vmem>>, vector<32x128xf32>
    %85 = arith.addf %83, %84 : vector<32x128xf32>
    %cst_41 = arith.constant dense<0xFF800000> : vector<32xf32>
    %86 = vector.multi_reduction <maximumf>, %85, %cst_41 [1] : vector<32x128xf32> to vector<32xf32>
    %87 = vector.shape_cast %86 : vector<32xf32> to vector<32x1xf32>
    %88 = vector.broadcast %87 : vector<32x1xf32> to vector<32x128xf32>
    %89 = arith.subf %85, %88 : vector<32x128xf32>
    %90 = math.exp %89 : vector<32x128xf32>
    %cst_42 = arith.constant dense<0.000000e+00> : vector<32x64xf32>
    %91 = tpu.matmul %90, %80, %cst_42 {dimension_numbers = #tpu.dot_dimension_numbers<[1], [0], [0], [1], [0, 0, 1, 1], [], []>} : vector<32x128xf32>, vector<128x64xf32>, vector<32x64xf32> -> vector<32x64xf32>
    %cst_43 = arith.constant dense<0.000000e+00> : vector<32x64xf32>
    %92 = tpu.matmul %90, %76, %cst_43 {dimension_numbers = #tpu.dot_dimension_numbers<[1], [0], [0], [1], [0, 0, 1, 1], [], []>} : vector<32x128xf32>, vector<128x64xf32>, vector<32x64xf32> -> vector<32x64xf32>
    %93 = tpu.reciprocal %92 {approx = true} : vector<32x64xf32> -> vector<32x64xf32>
    %94 = arith.mulf %92, %93 : vector<32x64xf32>
    %cst_44 = arith.constant 2.000000e+00 : f32
    %95 = vector.broadcast %cst_44 : f32 to vector<32x64xf32>
    %96 = arith.subf %95, %94 : vector<32x64xf32>
    %97 = arith.mulf %93, %96 : vector<32x64xf32>
    %98 = arith.mulf %91, %97 : vector<32x64xf32>
    %cst_45 = arith.constant 0.707106769 : f32
    %99 = vector.broadcast %cst_45 : f32 to vector<32x256xf32>
    %100 = arith.mulf %67, %99 : vector<32x256xf32>
    %101 = math.absf %100 : vector<32x256xf32>
    %cst_46 = arith.constant 0.000000e+00 : f32
    %102 = vector.broadcast %cst_46 : f32 to vector<32x256xf32>
    %103 = arith.cmpf oge, %100, %102 : vector<32x256xf32>
    %cst_47 = arith.constant 1.000000e+00 : f32
    %cst_48 = arith.constant -1.000000e+00 : f32
    %104 = vector.broadcast %cst_47 : f32 to vector<32x256xf32>
    %105 = vector.broadcast %cst_48 : f32 to vector<32x256xf32>
    %106 = arith.select %103, %104, %105 : vector<32x256xi1>, vector<32x256xf32>
    %cst_49 = arith.constant 0.327591091 : f32
    %107 = vector.broadcast %cst_49 : f32 to vector<32x256xf32>
    %108 = arith.mulf %107, %101 : vector<32x256xf32>
    %cst_50 = arith.constant 1.000000e+00 : f32
    %109 = vector.broadcast %cst_50 : f32 to vector<32x256xf32>
    %110 = arith.addf %109, %108 : vector<32x256xf32>
    %cst_51 = arith.constant 1.000000e+00 : f32
    %111 = vector.broadcast %cst_51 : f32 to vector<32x256xf32>
    %112 = arith.divf %111, %110 : vector<32x256xf32>
    %cst_52 = arith.constant 1.06140542 : f32
    %113 = vector.broadcast %cst_52 : f32 to vector<32x256xf32>
    %114 = arith.mulf %113, %112 : vector<32x256xf32>
    %cst_53 = arith.constant 1.45315206 : f32
    %115 = vector.broadcast %cst_53 : f32 to vector<32x256xf32>
    %116 = arith.subf %114, %115 : vector<32x256xf32>
    %117 = arith.mulf %116, %112 : vector<32x256xf32>
    %cst_54 = arith.constant 1.42141378 : f32
    %118 = vector.broadcast %cst_54 : f32 to vector<32x256xf32>
    %119 = arith.addf %117, %118 : vector<32x256xf32>
    %120 = arith.mulf %119, %112 : vector<32x256xf32>
    %cst_55 = arith.constant 0.284496725 : f32
    %121 = vector.broadcast %cst_55 : f32 to vector<32x256xf32>
    %122 = arith.subf %120, %121 : vector<32x256xf32>
    %123 = arith.mulf %122, %112 : vector<32x256xf32>
    %cst_56 = arith.constant 0.254829586 : f32
    %124 = vector.broadcast %cst_56 : f32 to vector<32x256xf32>
    %125 = arith.addf %123, %124 : vector<32x256xf32>
    %126 = arith.mulf %125, %112 : vector<32x256xf32>
    %cst_57 = arith.constant 0.000000e+00 : f32
    %127 = vector.broadcast %cst_57 : f32 to vector<32x256xf32>
    %128 = arith.subf %127, %101 : vector<32x256xf32>
    %129 = arith.mulf %128, %101 : vector<32x256xf32>
    %130 = math.exp %129 : vector<32x256xf32>
    %131 = arith.mulf %126, %130 : vector<32x256xf32>
    %cst_58 = arith.constant 1.000000e+00 : f32
    %132 = vector.broadcast %cst_58 : f32 to vector<32x256xf32>
    %133 = arith.subf %132, %131 : vector<32x256xf32>
    %134 = arith.mulf %106, %133 : vector<32x256xf32>
    %cst_59 = arith.constant 5.000000e-01 : f32
    %135 = vector.broadcast %cst_59 : f32 to vector<32x256xf32>
    %136 = arith.mulf %135, %67 : vector<32x256xf32>
    %cst_60 = arith.constant 1.000000e+00 : f32
    %137 = vector.broadcast %cst_60 : f32 to vector<32x256xf32>
    %138 = arith.addf %137, %134 : vector<32x256xf32>
    %139 = arith.mulf %136, %138 : vector<32x256xf32>
    %cst_61 = arith.constant dense<0.000000e+00> : vector<32x64xf32>
    %140 = tpu.matmul %98, %61, %cst_61 {dimension_numbers = #tpu.dot_dimension_numbers<[1], [0], [0], [1], [0, 0, 1, 1], [], []>} : vector<32x64xf32>, vector<64x64xf32>, vector<32x64xf32> -> vector<32x64xf32>
    %141 = arith.truncf %139 : vector<32x256xf32> to vector<32x256xbf16>
    %c0_62 = arith.constant 0 : index
    %c0_63 = arith.constant 0 : index
    %142 = vector.load %arg4[%c0_62, %c0_63] : memref<256x64xbf16, #tpu.memory_space<vmem>>, vector<256x64xbf16>
    %cst_64 = arith.constant dense<0.000000e+00> : vector<32x64xf32>
    %143 = tpu.matmul %141, %142, %cst_64 {dimension_numbers = #tpu.dot_dimension_numbers<[1], [0], [0], [1], [0, 0, 1, 1], [], []>} : vector<32x256xbf16>, vector<256x64xbf16>, vector<32x64xf32> -> vector<32x64xf32>
    %144 = arith.addf %140, %143 : vector<32x64xf32>
    %145 = vector.broadcast %3 : vector<1x64xf32> to vector<32x64xf32>
    %146 = arith.addf %144, %145 : vector<32x64xf32>
    %c0_65 = arith.constant 0 : index
    %c0_66 = arith.constant 0 : index
    %147 = vector.load %arg8[%c0_65, %c0_66] : memref<32x64xf32, #tpu.memory_space<vmem>>, vector<32x64xf32>
    tpu.vector_store %arg8[%c0_65, %c0_66], %146 {strides = array<i32>} : memref<32x64xf32, #tpu.memory_space<vmem>>, vector<32x64xf32>,
    return
  }
}

</mosaic_0001>

<llo_original>
// kernel: tpu_custom_call.1
$region0: #{tpu_custom_call.1}
  #allocation0 [shape = 'u32[]', space=smem, size = 0x4, offset = 0x4, fixed_abs, tag = 'smem constant byte address 0x4 - core index']
  #allocation1 [shape = 'u32[144,128]{1,0:T(1,128)}', space=vmem, size = 0x12000, scoped, tag = 'internal scratch']
  %s0 = inlined_call_operand.vmem [shape: f32[32,64], index: 0, kind: input, shape index: {}]
  %s1 = inlined_call_operand.vmem [shape: f32[168,64], index: 1, kind: input, shape index: {}]
  %s2 = inlined_call_operand.vmem [shape: f32[320,64], index: 2, kind: input, shape index: {}]
  %s3 = inlined_call_operand.vmem [shape: bf16[64,256], index: 3, kind: input, shape index: {}]
  %s4 = inlined_call_operand.vmem [shape: bf16[256,64], index: 4, kind: input, shape index: {}]
  %s5 = inlined_call_operand.vmem [shape: f32[32,32], index: 5, kind: input, shape index: {}]
  %s6 = inlined_call_operand.vmem [shape: f32[32,128], index: 6, kind: input, shape index: {}]
  %s7 = inlined_call_operand.vmem [shape: f32[128,64], index: 7, kind: input, shape index: {}]
  %s8 = inlined_call_operand.hbm [shape: f32[32,64], index: 8, kind: output, shape index: {}]
  %s9 = sld [smem:[#allocation0]]
  $region42: #{tpu_custom_call.1} parent=0
    _
  %s11 = ssub.s32 1, %s9
  %s12 = scalar_select 0, %s11, %s9
  $region1: #{tpu_custom_call.1} parent=0
    #allocation2 [shape = 'u8[16384]{0}', space=vmem, size = 0x4000, scoped, tag = 'output window, operand 0, single buffered']
    #allocation3 [shape = 's32[1]{0}', space=sflag, size = 0x4, scoped, tag = 'scoped memory for tpu_custom_call.1']
    %13 = vsyncpa [#allocation3], 0
    // Predicated region
    $region2: #{tpu_custom_call.1} parent=1 // pred_check
      _
    $region3: #{tpu_custom_call.1} parent=1 // pred_check_branch
      %15 = sbr.rel (0) target = $region5
    $region4: #{tpu_custom_call.1} parent=1 // pred_region
      _
    $region5: #{tpu_custom_call.1} parent=1 // pred_fallthru
      _
    // Predicated region
    $region6: #{tpu_custom_call.1} parent=1 // pred_check
      _
    $region7: #{tpu_custom_call.1} parent=1 // pred_check_branch
      %17 = sbr.rel (0) target = $region9
    $region8: #{tpu_custom_call.1} parent=1 // pred_region
      _
    $region9: #{tpu_custom_call.1} parent=1 // pred_fallthru
      _
    // Predicated region
    $region10: #{tpu_custom_call.1} parent=1 // pred_check
      _
    $region11: #{tpu_custom_call.1} parent=1 // pred_check_branch
      %19 = sbr.rel (0) target = $region13
    $region12: #{tpu_custom_call.1} parent=1 // pred_region
      _
    $region13: #{tpu_custom_call.1} parent=1 // pred_fallthru
      _
    // Predicated region
    $region14: #{tpu_custom_call.1} parent=1 // pred_check
      _
    $region15: #{tpu_custom_call.1} parent=1 // pred_check_branch
      %21 = sbr.rel (0) target = $region17
    $region16: #{tpu_custom_call.1} parent=1 // pred_region
      _
    $region17: #{tpu_custom_call.1} parent=1 // pred_fallthru
      _
    // Predicated region
    $region18: #{tpu_custom_call.1} parent=1 // pred_check
      _
    $region19: #{tpu_custom_call.1} parent=1 // pred_check_branch
      %23 = sbr.rel (0) target = $region21
    $region20: #{tpu_custom_call.1} parent=1 // pred_region
      _
    $region21: #{tpu_custom_call.1} parent=1 // pred_fallthru
      _
    // Predicated region
    $region22: #{tpu_custom_call.1} parent=1 // pred_check
      _
    $region23: #{tpu_custom_call.1} parent=1 // pred_check_branch
      %25 = sbr.rel (0) target = $region25
    $region24: #{tpu_custom_call.1} parent=1 // pred_region
      _
    $region25: #{tpu_custom_call.1} parent=1 // pred_fallthru
      _
    // Predicated region
    $region26: #{tpu_custom_call.1} parent=1 // pred_check
      _
    $region27: #{tpu_custom_call.1} parent=1 // pred_check_branch
      %27 = sbr.rel (0) target = $region29
    $region28: #{tpu_custom_call.1} parent=1 // pred_region
      _
    $region29: #{tpu_custom_call.1} parent=1 // pred_fallthru
      _
    // Predicated region
    $region30: #{tpu_custom_call.1} parent=1 // pred_check
      _
    $region31: #{tpu_custom_call.1} parent=1 // pred_check_branch
      %29 = sbr.rel (0) target = $region33
    $region32: #{tpu_custom_call.1} parent=1 // pred_region
      _
    $region33: #{tpu_custom_call.1} parent=1 // pred_fallthru
      _
    %v31 = vld [vmem:[%s0] sm:$0xff]
    %v32 = vld [vmem:[%s0 + $0x8] sm:$0xff]
    %v33 = vld [vmem:[%s0 + $0x10] sm:$0xff]
    %v34 = vld [vmem:[%s0 + $0x18] sm:$0xff]
    %v35 = vld [vmem:[%s1] sm:$0x1]
    %v36 = vld [vmem:[%s1 + $0x8] sm:$0x1]
    %v37 = vld [vmem:[%s1 + $0x10] sm:$0x1]
    %v38 = vld [vmem:[%s1 + $0x18] sm:$0x1]
    %v39 = vld [vmem:[%s1 + $0x20] sm:$0x1]
    %v40 = vld [vmem:[%s1 + $0x28] sm:$0xff]
    %v41 = vld [vmem:[%s1 + $0x30] sm:$0xff]
    %v42 = vld [vmem:[%s1 + $0x38] sm:$0xff]
    %v43 = vld [vmem:[%s1 + $0x40] sm:$0xff]
    %v44 = vld [vmem:[%s1 + $0x48] sm:$0xff]
    %v45 = vld [vmem:[%s1 + $0x50] sm:$0xff]
    %v46 = vld [vmem:[%s1 + $0x58] sm:$0xff]
    %v47 = vld [vmem:[%s1 + $0x60] sm:$0xff]
    %v48 = vld [vmem:[%s1 + $0x68] sm:$0xff]
    %v49 = vld [vmem:[%s1 + $0x70] sm:$0xff]
    %v50 = vld [vmem:[%s1 + $0x78] sm:$0xff]
    %v51 = vld [vmem:[%s1 + $0x80] sm:$0xff]
    %v52 = vld [vmem:[%s1 + $0x88] sm:$0xff]
    %v53 = vld [vmem:[%s1 + $0x90] sm:$0xff]
    %v54 = vld [vmem:[%s1 + $0x98] sm:$0xff]
    %v55 = vld [vmem:[%s1 + $0xa0] sm:$0xff]
    %vm56 = vcmask 523264
    %v57 = vsel %vm56, %v31, 0.0
    %58 = vadd.xlane.f32.xlu0 %v57
    %v59 = vpop.xlane.xlu0 %58
    %v60 = vsel %vm56, %v32, 0.0
    %61 = vadd.xlane.f32.xlu0 %v60
    %v62 = vpop.xlane.xlu0 %61
    %v63 = vsel %vm56, %v33, 0.0
    %64 = vadd.xlane.f32.xlu0 %v63
    %v65 = vpop.xlane.xlu0 %64
    %v66 = vsel %vm56, %v34, 0.0
    %67 = vadd.xlane.f32.xlu0 %v66
    %v68 = vpop.xlane.xlu0 %67
    %v69 = vmul.f32 %v59, 0.015625
    %v70 = vmul.f32 %v62, 0.015625
    %v71 = vmul.f32 %v65, 0.015625
    %v72 = vmul.f32 %v68, 0.015625
    %v73 = vmul.f32 %v31, %v31
    %v74 = vmul.f32 %v32, %v32
    %v75 = vmul.f32 %v33, %v33
    %v76 = vmul.f32 %v34, %v34
    %v77 = vsel %vm56, %v73, 0.0
    %78 = vadd.xlane.f32.xlu0 %v77
    %v79 = vpop.xlane.xlu0 %78
    %v80 = vsel %vm56, %v74, 0.0
    %81 = vadd.xlane.f32.xlu0 %v80
    %v82 = vpop.xlane.xlu0 %81
    %v83 = vsel %vm56, %v75, 0.0
    %84 = vadd.xlane.f32.xlu0 %v83
    %v85 = vpop.xlane.xlu0 %84
    %v86 = vsel %vm56, %v76, 0.0
    %87 = vadd.xlane.f32.xlu0 %v86
    %v88 = vpop.xlane.xlu0 %87
    %v89 = vmul.f32 %v79, 0.015625
    %v90 = vmul.f32 %v82, 0.015625
    %v91 = vmul.f32 %v85, 0.015625
    %v92 = vmul.f32 %v88, 0.015625
    %v93 = vmul.f32 %v69, %v69
    %v94 = vmul.f32 %v70, %v70
    %v95 = vmul.f32 %v71, %v71
    %v96 = vmul.f32 %v72, %v72
    %v97 = vsub.f32 %v89, %v93
    %v98 = vsub.f32 %v90, %v94
    %v99 = vsub.f32 %v91, %v95
    %v100 = vsub.f32 %v92, %v96
    %v101 = vsub.f32 %v31, %v69
    %v102 = vsub.f32 %v32, %v70
    %v103 = vsub.f32 %v33, %v71
    %v104 = vsub.f32 %v34, %v72
    %v105 = vadd.f32 %v97, 1e-05
    %v106 = vadd.f32 %v98, 1e-05
    %v107 = vadd.f32 %v99, 1e-05
    %v108 = vadd.f32 %v100, 1e-05
    %v109 = vrsqrt.pop %v105
    %v110 = vrsqrt.pop %v106
    %v111 = vrsqrt.pop %v107
    %v112 = vrsqrt.pop %v108
    %v113 = vmul.f32 %v101, %v109
    %v114 = vmul.f32 %v102, %v110
    %v115 = vmul.f32 %v103, %v111
    %v116 = vmul.f32 %v104, %v112
    %v117 = vlaneseq
    %v118 = vshrl.u32 %v117, 7
    %v119 = vsub.s32 0, %v118
    %v120 = vrot.slane %v35, %v119
    %v121 = vmul.f32 %v113, %v120
    %v122 = vmul.f32 %v114, %v120
    %v123 = vmul.f32 %v115, %v120
    %v124 = vmul.f32 %v116, %v120
    %v125 = vlaneseq
    %v126 = vshrl.u32 %v125, 7
    %v127 = vsub.s32 0, %v126
    %v128 = vrot.slane %v36, %v127
    %v129 = vadd.f32 %v121, %v128
    %v130 = vadd.f32 %v122, %v128
    %v131 = vadd.f32 %v123, %v128
    %v132 = vadd.f32 %v124, %v128
    %v133 = vmul.f32 %v129, 5.0
    %v134 = vmul.f32 %v130, 5.0
    %v135 = vmul.f32 %v131, 5.0
    %v136 = vmul.f32 %v132, 5.0
    %v137 = vsel %vm56, %v133, -inf
    %v138 = vsel %vm56, %v134, -inf
    %v139 = vsel %vm56, %v135, -inf
    %v140 = vsel %vm56, %v136, -inf
    %v141 = vmax.f32 %v137, %v138
    %v142 = vmax.f32 %v139, %v140
    %v143 = vmax.f32 %v141, %v142
    %v144 = vrot.slane %v143, 4
    %v145 = vmax.f32 %v143, %v144
    %v146 = vrot.slane %v145, 2
    %v147 = vmax.f32 %v145, %v146
    %v148 = vrot.slane %v147, 1
    %v149 = vmax.f32 %v147, %v148
    %v150 = vsub.f32 %v133, %v149
    %v151 = vsub.f32 %v134, %v149
    %v152 = vsub.f32 %v135, %v149
    %v153 = vsub.f32 %v136, %v149
    %v154 = vmul.f32 %v150, 1.442695
    %v155 = vpow.pop %v154
    %v156 = vmul.f32 %v151, 1.442695
    %v157 = vpow.pop %v156
    %v158 = vmul.f32 %v152, 1.442695
    %v159 = vpow.pop %v158
    %v160 = vmul.f32 %v153, 1.442695
    %v161 = vpow.pop %v160
    %v162 = vld [vmem:[%s5] sm:$0xff]
    %v163 = vld [vmem:[%s5 + $0x8] sm:$0xff]
    %v164 = vld [vmem:[%s5 + $0x10] sm:$0xff]
    %v165 = vld [vmem:[%s5 + $0x18] sm:$0xff]
    %vm166 = vcmask 261120
    %v168 = vsel %vm166, %v162, 0
    %v171 = vsel %vm166, %v163, 0
    %v174 = vsel %vm166, %v164, 0
    %v177 = vsel %vm166, %v165, 0
    %179 = vmatprep.subr.mxu0 0.0
    %180 = vmatpush1.msra.mxu0 %v155
    %181 = vmatprep.subr.mxu0 0.0
    %182 = vmatpush1.msra.mxu0 %v157
    %183 = vmatprep.subr.mxu0 0.0
    %184 = vmatpush1.msra.mxu0 %v159
    %185 = vmatprep.subr.mxu0 0.0
    %186 = vmatpush1.msra.mxu0 %v161
    %187 = vmatprep.subr.mxu0 0.0
    %188 = vmatpush1.msra.mxu0 0.0
    %189 = vmatprep.subr.mxu0 0.0
    %190 = vmatpush1.msra.mxu0 0.0
    %191 = vmatprep.subr.mxu0 0.0
    %192 = vmatpush1.msra.mxu0 0.0
    %193 = vmatprep.subr.mxu0 0.0
    %194 = vmatpush1.msra.mxu0 0.0
    %195 = vmatprep.subr.mxu0 0.0
    %196 = vmatpush1.msra.mxu0 0.0
    %197 = vmatprep.subr.mxu0 0.0
    %198 = vmatpush1.msra.mxu0 0.0
    %199 = vmatprep.subr.mxu0 0.0
    %200 = vmatpush1.msra.mxu0 0.0
    %201 = vmatprep.subr.mxu0 0.0
    %202 = vmatpush1.msra.mxu0 0.0
    %203 = vmatprep.subr.mxu0 0.0
    %204 = vmatpush1.msra.mxu0 0.0
    %205 = vmatprep.subr.mxu0 0.0
    %206 = vmatpush1.msra.mxu0 0.0
    %207 = vmatprep.subr.mxu0 0.0
    %208 = vmatpush1.msra.mxu0 0.0
    %209 = vmatprep.subr.mxu0 0.0
    %210 = vmatpush1.msra.mxu0 0.0
    %211 = vmatprep.subr.mxu0 0.0
    %212 = vmatpush1.msra.mxu0 0.0
    %213 = vmatprep.subr.mxu0 0.0
    %214 = vmatpush1.msra.mxu0 0.0
    %215 = vmatprep.subr.mxu0 0.0
    %216 = vmatpush1.msra.mxu0 0.0
    %217 = vmatprep.subr.mxu0 0.0
    %218 = vmatpush1.msra.mxu0 0.0
    %219 = vmatprep.subr.mxu0 0.0
    %220 = vmatpush1.msra.mxu0 0.0
    %221 = vmatprep.subr.mxu0 0.0
    %222 = vmatpush1.msra.mxu0 0.0
    %223 = vmatprep.subr.mxu0 0.0
    %224 = vmatpush1.msra.mxu0 0.0
    %225 = vmatprep.subr.mxu0 0.0
    %226 = vmatpush1.msra.mxu0 0.0
    %227 = vmatprep.subr.mxu0 0.0
    %228 = vmatpush1.msra.mxu0 0.0
    %229 = vmatprep.subr.mxu0 0.0
    %230 = vmatpush1.msra.mxu0 0.0
    %231 = vmatprep.subr.mxu0 0.0
    %232 = vmatpush1.msra.mxu0 0.0
    %233 = vmatprep.subr.mxu0 0.0
    %234 = vmatpush1.msra.mxu0 0.0
    %235 = vmatprep.subr.mxu0 0.0
    %236 = vmatpush1.msra.mxu0 0.0
    %237 = vmatprep.subr.mxu0 0.0
    %238 = vmatpush1.msra.mxu0 0.0
    %239 = vmatprep.subr.mxu0 0.0
    %240 = vmatpush1.msra.mxu0 0.0
    %241 = vmatprep.subr.mxu0 0.0
    %242 = vmatpush1.msra.mxu0 0.0
    %243 = vmatprep.mubr.f32.mxu0 0.0
    %244 = vmatmul.mubr.f32.gmra.mrb[0].mxu0 %v168
    %v245 = vpop.f32.mrb[0].mxu0
    %v246 = vadd.f32 0.0, %v245
    %v247 = vpop.f32.mrb[0].mxu0
    %248 = vmatprep.mubr.f32.mxu0 0.0
    %249 = vmatmul.mubr.f32.gmra.mrb[0].mxu0 %v171
    %v250 = vpop.f32.mrb[0].mxu0
    %v251 = vadd.f32 0.0, %v250
    %v252 = vpop.f32.mrb[0].mxu0
    %253 = vmatprep.mubr.f32.mxu0 0.0
    %254 = vmatmul.mubr.f32.gmra.mrb[0].mxu0 %v174
    %v255 = vpop.f32.mrb[0].mxu0
    %v256 = vadd.f32 0.0, %v255
    %v257 = vpop.f32.mrb[0].mxu0
    %258 = vmatprep.mubr.f32.mxu0 0.0
    %259 = vmatmul.mubr.f32.gmra.mrb[0].mxu0 %v177
    %v260 = vpop.f32.mrb[0].mxu0
    %v261 = vadd.f32 0.0, %v260
    %v262 = vpop.f32.mrb[0].mxu0
    %263 = vdwg.mxu0
    %v264 = vlog2.pop %v246
    %v265 = vmul.f32 %v264, 0.6931472
    %v266 = vlog2.pop %v251
    %v267 = vmul.f32 %v266, 0.6931472
    %v268 = vlog2.pop %v256
    %v269 = vmul.f32 %v268, 0.6931472
    %v270 = vlog2.pop %v261
    %v271 = vmul.f32 %v270, 0.6931472
    %v272 = vadd.f32 %v265, %v149
    %v273 = vadd.f32 %v267, %v149
    %v274 = vadd.f32 %v269, %v149
    %v275 = vadd.f32 %v271, %v149
    %v276 = vmul.f32 %v272, 0.2
    %v277 = vmul.f32 %v273, 0.2
    %v278 = vmul.f32 %v274, 0.2
    %v279 = vmul.f32 %v275, 0.2
    %v280 = vlaneseq
    %v281 = vshrl.u32 %v280, 7
    %v282 = vsub.s32 0, %v281
    %v283 = vrot.slane %v38, %v282
    %v284 = vmul.f32 %v129, %v283
    %v285 = vmul.f32 %v130, %v283
    %v286 = vmul.f32 %v131, %v283
    %v287 = vmul.f32 %v132, %v283
    %v288 = vlaneseq
    %v289 = vshrl.u32 %v288, 7
    %v290 = vsub.s32 0, %v289
    %v291 = vrot.slane %v39, %v290
    %v292 = vmul.f32 %v276, %v291
    %v293 = vmul.f32 %v277, %v291
    %v294 = vmul.f32 %v278, %v291
    %v295 = vmul.f32 %v279, %v291
    %v296 = vadd.f32 %v284, %v292
    %v297 = vadd.f32 %v285, %v293
    %v298 = vadd.f32 %v286, %v294
    %v299 = vadd.f32 %v287, %v295
    %v300 = vrot.slane %v129, 7
    %v301 = vrot.slane %v130, 7
    %v302 = vrot.slane %v131, 7
    %v303 = vrot.slane %v132, 7
    %v304 = vlaneseq
    %v305 = vshrl.u32 %v304, 7
    %vm306 = vcmp.lt.s32.totalorder %v305, 1
    %v307 = vsel %vm306, %v302, %v303
    %v308 = vsel %vm306, %v301, %v302
    %v309 = vsel %vm306, %v300, %v301
    %v310 = vsel %vm306, %v303, %v300
    %v311 = vmul.f32 %v310, %v48
    %v312 = vmul.f32 %v309, %v49
    %v313 = vmul.f32 %v308, %v50
    %v314 = vmul.f32 %v307, %v51
    %v315 = vadd.f32 %v296, %v311
    %v316 = vadd.f32 %v297, %v312
    %v317 = vadd.f32 %v298, %v313
    %v318 = vadd.f32 %v299, %v314
    %v319 = vrot.slane %v129, 6
    %v320 = vrot.slane %v130, 6
    %v321 = vrot.slane %v131, 6
    %v322 = vrot.slane %v132, 6
    %vm323 = vcmp.lt.s32.totalorder %v305, 2
    %v324 = vsel %vm323, %v321, %v322
    %v325 = vsel %vm323, %v320, %v321
    %v326 = vsel %vm323, %v319, %v320
    %v327 = vsel %vm323, %v322, %v319
    %v328 = vmul.f32 %v327, %v52
    %v329 = vmul.f32 %v326, %v53
    %v330 = vmul.f32 %v325, %v54
    %v331 = vmul.f32 %v324, %v55
    %v332 = vadd.f32 %v315, %v328
    %v333 = vadd.f32 %v316, %v329
    %v334 = vadd.f32 %v317, %v330
    %v335 = vadd.f32 %v318, %v331
    %v336 = vld [vmem:[%s2] sm:$0xff]
    %v337 = vld [vmem:[%s2 + $0x8] sm:$0xff]
    %v338 = vld [vmem:[%s2 + $0x10] sm:$0xff]
    %v339 = vld [vmem:[%s2 + $0x18] sm:$0xff]
    %v340 = vld [vmem:[%s2 + $0x20] sm:$0xff]
    %v341 = vld [vmem:[%s2 + $0x28] sm:$0xff]
    %v342 = vld [vmem:[%s2 + $0x30] sm:$0xff]
    %v343 = vld [vmem:[%s2 + $0x38] sm:$0xff]
    %v344 = vld [vmem:[%s2 + $0x40] sm:$0xff]
    %v345 = vld [vmem:[%s2 + $0x48] sm:$0xff]
    %v346 = vld [vmem:[%s2 + $0x50] sm:$0xff]
    %v347 = vld [vmem:[%s2 + $0x58] sm:$0xff]
    %v348 = vld [vmem:[%s2 + $0x60] sm:$0xff]
    %v349 = vld [vmem:[%s2 + $0x68] sm:$0xff]
    %v350 = vld [vmem:[%s2 + $0x70] sm:$0xff]
    %v351 = vld [vmem:[%s2 + $0x78] sm:$0xff]
    %v352 = vld [vmem:[%s2 + $0x80] sm:$0xff]
    %v353 = vld [vmem:[%s2 + $0x88] sm:$0xff]
    %v354 = vld [vmem:[%s2 + $0x90] sm:$0xff]
    %v355 = vld [vmem:[%s2 + $0x98] sm:$0xff]
    %v356 = vld [vmem:[%s2 + $0xa0] sm:$0xff]
    %v357 = vld [vmem:[%s2 + $0xa8] sm:$0xff]
    %v358 = vld [vmem:[%s2 + $0xb0] sm:$0xff]
    %v359 = vld [vmem:[%s2 + $0xb8] sm:$0xff]
    %v360 = vld [vmem:[%s2 + $0xc0] sm:$0xff]
    %v361 = vld [vmem:[%s2 + $0xc8] sm:$0xff]
    %v362 = vld [vmem:[%s2 + $0xd0] sm:$0xff]
    %v363 = vld [vmem:[%s2 + $0xd8] sm:$0xff]
    %v364 = vld [vmem:[%s2 + $0xe0] sm:$0xff]
    %v365 = vld [vmem:[%s2 + $0xe8] sm:$0xff]
    %v366 = vld [vmem:[%s2 + $0xf0] sm:$0xff]
    %v367 = vld [vmem:[%s2 + $0xf8] sm:$0xff]
    %v368 = vld [vmem:[%s2 + $0x100] sm:$0xff]
    %v369 = vld [vmem:[%s2 + $0x108] sm:$0xff]
    %v370 = vld [vmem:[%s2 + $0x110] sm:$0xff]
    %v371 = vld [vmem:[%s2 + $0x118] sm:$0xff]
    %v372 = vld [vmem:[%s2 + $0x120] sm:$0xff]
    %v373 = vld [vmem:[%s2 + $0x128] sm:$0xff]
    %v374 = vld [vmem:[%s2 + $0x130] sm:$0xff]
    %v375 = vld [vmem:[%s2 + $0x138] sm:$0xff]
    %v377 = vsel %vm56, %v332, 0
    %v380 = vsel %vm56, %v333, 0
    %v383 = vsel %vm56, %v334, 0
    %v386 = vsel %vm56, %v335, 0
    %388 = vmatprep.subr.mxu0 0.0
    %389 = vmatpush1.msra.mxu0 %v336
    %390 = vmatprep.subr.mxu0 0.0
    %391 = vmatpush1.msra.mxu0 %v337
    %392 = vmatprep.subr.mxu0 0.0
    %393 = vmatpush1.msra.mxu0 %v338
    %394 = vmatprep.subr.mxu0 0.0
    %395 = vmatpush1.msra.mxu0 %v339
    %396 = vmatprep.subr.mxu0 0.0
    %397 = vmatpush1.msra.mxu0 %v340
    %398 = vmatprep.subr.mxu0 0.0
    %399 = vmatpush1.msra.mxu0 %v341
    %400 = vmatprep.subr.mxu0 0.0
    %401 = vmatpush1.msra.mxu0 %v342
    %402 = vmatprep.subr.mxu0 0.0
    %403 = vmatpush1.msra.mxu0 %v343
    %404 = vmatprep.subr.mxu0 0.0
    %405 = vmatpush1.msra.mxu0 0.0
    %406 = vmatprep.subr.mxu0 0.0
    %407 = vmatpush1.msra.mxu0 0.0
    %408 = vmatprep.subr.mxu0 0.0
    %409 = vmatpush1.msra.mxu0 0.0
    %410 = vmatprep.subr.mxu0 0.0
    %411 = vmatpush1.msra.mxu0 0.0
    %412 = vmatprep.subr.mxu0 0.0
    %413 = vmatpush1.msra.mxu0 0.0
    %414 = vmatprep.subr.mxu0 0.0
    %415 = vmatpush1.msra.mxu0 0.0
    %416 = vmatprep.subr.mxu0 0.0
    %417 = vmatpush1.msra.mxu0 0.0
    %418 = vmatprep.subr.mxu0 0.0
    %419 = vmatpush1.msra.mxu0 0.0
    %420 = vmatprep.subr.mxu0 0.0
    %421 = vmatpush1.msra.mxu0 0.0
    %422 = vmatprep.subr.mxu0 0.0
    %423 = vmatpush1.msra.mxu0 0.0
    %424 = vmatprep.subr.mxu0 0.0
    %425 = vmatpush1.msra.mxu0 0.0
    %426 = vmatprep.subr.mxu0 0.0
    %427 = vmatpush1.msra.mxu0 0.0
    %428 = vmatprep.subr.mxu0 0.0
    %429 = vmatpush1.msra.mxu0 0.0
    %430 = vmatprep.subr.mxu0 0.0
    %431 = vmatpush1.msra.mxu0 0.0
    %432 = vmatprep.subr.mxu0 0.0
    %433 = vmatpush1.msra.mxu0 0.0
    %434 = vmatprep.subr.mxu0 0.0
    %435 = vmatpush1.msra.mxu0 0.0
    %436 = vmatprep.subr.mxu0 0.0
    %437 = vmatpush1.msra.mxu0 0.0
    %438 = vmatprep.subr.mxu0 0.0
    %439 = vmatpush1.msra.mxu0 0.0
    %440 = vmatprep.subr.mxu0 0.0
    %441 = vmatpush1.msra.mxu0 0.0
    %442 = vmatprep.subr.mxu0 0.0
    %443 = vmatpush1.msra.mxu0 0.0
    %444 = vmatprep.subr.mxu0 0.0
    %445 = vmatpush1.msra.mxu0 0.0
    %446 = vmatprep.subr.mxu0 0.0
    %447 = vmatpush1.msra.mxu0 0.0
    %448 = vmatprep.subr.mxu0 0.0
    %449 = vmatpush1.msra.mxu0 0.0
    %450 = vmatprep.subr.mxu0 0.0
    %451 = vmatpush1.msra.mxu0 0.0
    %452 = vmatprep.mubr.f32.mxu0 0.0
    %453 = vmatmul.mubr.f32.gmra.mrb[0].mxu0 %v377
    %v454 = vpop.f32.mrb[0].mxu0
    %v455 = vadd.f32 0.0, %v454
    %v456 = vpop.f32.mrb[0].mxu0
    %457 = vmatprep.mubr.f32.mxu0 0.0
    %458 = vmatmul.mubr.f32.gmra.mrb[0].mxu0 %v380
    %v459 = vpop.f32.mrb[0].mxu0
    %v460 = vadd.f32 0.0, %v459
    %v461 = vpop.f32.mrb[0].mxu0
    %462 = vmatprep.mubr.f32.mxu0 0.0
    %463 = vmatmul.mubr.f32.gmra.mrb[0].mxu0 %v383
    %v464 = vpop.f32.mrb[0].mxu0
    %v465 = vadd.f32 0.0, %v464
    %v466 = vpop.f32.mrb[0].mxu0
    %467 = vmatprep.mubr.f32.mxu0 0.0
    %468 = vmatmul.mubr.f32.gmra.mrb[0].mxu0 %v386
    %v469 = vpop.f32.mrb[0].mxu0
    %v470 = vadd.f32 0.0, %v469
    %v471 = vpop.f32.mrb[0].mxu0
    %472 = vdwg.mxu0
    %473 = vmatprep.subr.mxu0 0.0
    %474 = vmatpush1.msra.mxu0 %v344
    %475 = vmatprep.subr.mxu0 0.0
    %476 = vmatpush1.msra.mxu0 %v345
    %477 = vmatprep.subr.mxu0 0.0
    %478 = vmatpush1.msra.mxu0 %v346
    %479 = vmatprep.subr.mxu0 0.0
    %480 = vmatpush1.msra.mxu0 %v347
    %481 = vmatprep.subr.mxu0 0.0
    %482 = vmatpush1.msra.mxu0 %v348
    %483 = vmatprep.subr.mxu0 0.0
    %484 = vmatpush1.msra.mxu0 %v349
    %485 = vmatprep.subr.mxu0 0.0
    %486 = vmatpush1.msra.mxu0 %v350
    %487 = vmatprep.subr.mxu0 0.0
    %488 = vmatpush1.msra.mxu0 %v351
    %489 = vmatprep.subr.mxu0 0.0
    %490 = vmatpush1.msra.mxu0 0.0
    %491 = vmatprep.subr.mxu0 0.0
    %492 = vmatpush1.msra.mxu0 0.0
    %493 = vmatprep.subr.mxu0 0.0
    %494 = vmatpush1.msra.mxu0 0.0
    %495 = vmatprep.subr.mxu0 0.0
    %496 = vmatpush1.msra.mxu0 0.0
    %497 = vmatprep.subr.mxu0 0.0
    %498 = vmatpush1.msra.mxu0 0.0
    %499 = vmatprep.subr.mxu0 0.0
    %500 = vmatpush1.msra.mxu0 0.0
    %501 = vmatprep.subr.mxu0 0.0
    %502 = vmatpush1.msra.mxu0 0.0
    %503 = vmatprep.subr.mxu0 0.0
    %504 = vmatpush1.msra.mxu0 0.0
    %505 = vmatprep.subr.mxu0 0.0
    %506 = vmatpush1.msra.mxu0 0.0
    %507 = vmatprep.subr.mxu0 0.0
    %508 = vmatpush1.msra.mxu0 0.0
    %509 = vmatprep.subr.mxu0 0.0
    %510 = vmatpush1.msra.mxu0 0.0
    %511 = vmatprep.subr.mxu0 0.0
    %512 = vmatpush1.msra.mxu0 0.0
    %513 = vmatprep.subr.mxu0 0.0
    %514 = vmatpush1.msra.mxu0 0.0
    %515 = vmatprep.subr.mxu0 0.0
    %516 = vmatpush1.msra.mxu0 0.0
    %517 = vmatprep.subr.mxu0 0.0
    %518 = vmatpush1.msra.mxu0 0.0
    %519 = vmatprep.subr.mxu0 0.0
    %520 = vmatpush1.msra.mxu0 0.0
    %521 = vmatprep.subr.mxu0 0.0
    %522 = vmatpush1.msra.mxu0 0.0
    %523 = vmatprep.subr.mxu0 0.0
    %524 = vmatpush1.msra.mxu0 0.0
    %525 = vmatprep.subr.mxu0 0.0
    %526 = vmatpush1.msra.mxu0 0.0
    %527 = vmatprep.subr.mxu0 0.0
    %528 = vmatpush1.msra.mxu0 0.0
    %529 = vmatprep.subr.mxu0 0.0
    %530 = vmatpush1.msra.mxu0 0.0
    %531 = vmatprep.subr.mxu0 0.0
    %532 = vmatpush1.msra.mxu0 0.0
    %533 = vmatprep.subr.mxu0 0.0
    %534 = vmatpush1.msra.mxu0 0.0
    %535 = vmatprep.subr.mxu0 0.0
    %536 = vmatpush1.msra.mxu0 0.0
    %537 = vmatprep.mubr.f32.mxu0 0.0
    %538 = vmatmul.mubr.f32.gmra.mrb[0].mxu0 %v377
    %v539 = vpop.f32.mrb[0].mxu0
    %v540 = vadd.f32 0.0, %v539
    %v541 = vpop.f32.mrb[0].mxu0
    %542 = vmatprep.mubr.f32.mxu0 0.0
    %543 = vmatmul.mubr.f32.gmra.mrb[0].mxu0 %v380
    %v544 = vpop.f32.mrb[0].mxu0
    %v545 = vadd.f32 0.0, %v544
    %v546 = vpop.f32.mrb[0].mxu0
    %547 = vmatprep.mubr.f32.mxu0 0.0
    %548 = vmatmul.mubr.f32.gmra.mrb[0].mxu0 %v383
    %v549 = vpop.f32.mrb[0].mxu0
    %v550 = vadd.f32 0.0, %v549
    %v551 = vpop.f32.mrb[0].mxu0
    %552 = vmatprep.mubr.f32.mxu0 0.0
    %553 = vmatmul.mubr.f32.gmra.mrb[0].mxu0 %v386
    %v554 = vpop.f32.mrb[0].mxu0
    %v555 = vadd.f32 0.0, %v554
    %v556 = vpop.f32.mrb[0].mxu0
    %557 = vdwg.mxu0
    %558 = vmatprep.subr.mxu0 0.0
    %559 = vmatpush1.msra.mxu0 %v352
    %560 = vmatprep.subr.mxu0 0.0
    %561 = vmatpush1.msra.mxu0 %v353
    %562 = vmatprep.subr.mxu0 0.0
    %563 = vmatpush1.msra.mxu0 %v354
    %564 = vmatprep.subr.mxu0 0.0
    %565 = vmatpush1.msra.mxu0 %v355
    %566 = vmatprep.subr.mxu0 0.0
    %567 = vmatpush1.msra.mxu0 %v356
    %568 = vmatprep.subr.mxu0 0.0
    %569 = vmatpush1.msra.mxu0 %v357
    %570 = vmatprep.subr.mxu0 0.0
    %571 = vmatpush1.msra.mxu0 %v358
    %572 = vmatprep.subr.mxu0 0.0
    %573 = vmatpush1.msra.mxu0 %v359
    %574 = vmatprep.subr.mxu0 0.0
    %575 = vmatpush1.msra.mxu0 0.0
    %576 = vmatprep.subr.mxu0 0.0
    %577 = vmatpush1.msra.mxu0 0.0
    %578 = vmatprep.subr.mxu0 0.0
    %579 = vmatpush1.msra.mxu0 0.0
    %580 = vmatprep.subr.mxu0 0.0
    %581 = vmatpush1.msra.mxu0 0.0
    %582 = vmatprep.subr.mxu0 0.0
    %583 = vmatpush1.msra.mxu0 0.0
    %584 = vmatprep.subr.mxu0 0.0
    %585 = vmatpush1.msra.mxu0 0.0
    %586 = vmatprep.subr.mxu0 0.0
    %587 = vmatpush1.msra.mxu0 0.0
    %588 = vmatprep.subr.mxu0 0.0
    %589 = vmatpush1.msra.mxu0 0.0
    %590 = vmatprep.subr.mxu0 0.0
    %591 = vmatpush1.msra.mxu0 0.0
    %592 = vmatprep.subr.mxu0 0.0
    %593 = vmatpush1.msra.mxu0 0.0
    %594 = vmatprep.subr.mxu0 0.0
    %595 = vmatpush1.msra.mxu0 0.0
    %596 = vmatprep.subr.mxu0 0.0
    %597 = vmatpush1.msra.mxu0 0.0
    %598 = vmatprep.subr.mxu0 0.0
    %599 = vmatpush1.msra.mxu0 0.0
    %600 = vmatprep.subr.mxu0 0.0
    %601 = vmatpush1.msra.mxu0 0.0
    %602 = vmatprep.subr.mxu0 0.0
    %603 = vmatpush1.msra.mxu0 0.0
    %604 = vmatprep.subr.mxu0 0.0
    %605 = vmatpush1.msra.mxu0 0.0
    %606 = vmatprep.subr.mxu0 0.0
    %607 = vmatpush1.msra.mxu0 0.0
    %608 = vmatprep.subr.mxu0 0.0
    %609 = vmatpush1.msra.mxu0 0.0
    %610 = vmatprep.subr.mxu0 0.0
    %611 = vmatpush1.msra.mxu0 0.0
    %612 = vmatprep.subr.mxu0 0.0
    %613 = vmatpush1.msra.mxu0 0.0
    %614 = vmatprep.subr.mxu0 0.0
    %615 = vmatpush1.msra.mxu0 0.0
    %616 = vmatprep.subr.mxu0 0.0
    %617 = vmatpush1.msra.mxu0 0.0
    %618 = vmatprep.subr.mxu0 0.0
    %619 = vmatpush1.msra.mxu0 0.0
    %620 = vmatprep.subr.mxu0 0.0
    %621 = vmatpush1.msra.mxu0 0.0
    %622 = vmatprep.mubr.f32.mxu0 0.0
    %623 = vmatmul.mubr.f32.gmra.mrb[0].mxu0 %v377
    %v624 = vpop.f32.mrb[0].mxu0
    %v625 = vadd.f32 0.0, %v624
    %v626 = vpop.f32.mrb[0].mxu0
    %627 = vmatprep.mubr.f32.mxu0 0.0
    %628 = vmatmul.mubr.f32.gmra.mrb[0].mxu0 %v380
    %v629 = vpop.f32.mrb[0].mxu0
    %v630 = vadd.f32 0.0, %v629
    %v631 = vpop.f32.mrb[0].mxu0
    %632 = vmatprep.mubr.f32.mxu0 0.0
    %633 = vmatmul.mubr.f32.gmra.mrb[0].mxu0 %v383
    %v634 = vpop.f32.mrb[0].mxu0
    %v635 = vadd.f32 0.0, %v634
    %v636 = vpop.f32.mrb[0].mxu0
    %637 = vmatprep.mubr.f32.mxu0 0.0
    %638 = vmatmul.mubr.f32.gmra.mrb[0].mxu0 %v386
    %v639 = vpop.f32.mrb[0].mxu0
    %v640 = vadd.f32 0.0, %v639
    %v641 = vpop.f32.mrb[0].mxu0
    %642 = vdwg.mxu0
    %v643 = vpack.c.bf16 %v333, %v332
    %v644 = vpack.c.bf16 %v335, %v334
    %v645 = vld [vmem:[%s3] sm:$0xff]
    %v646 = vld [vmem:[%s3 + $0x8] sm:$0xff]
    %v647 = vld [vmem:[%s3 + $0x10] sm:$0xff]
    %v648 = vld [vmem:[%s3 + $0x18] sm:$0xff]
    %v649 = vld [vmem:[%s3 + $0x20] sm:$0xff]
    %v650 = vld [vmem:[%s3 + $0x28] sm:$0xff]
    %v651 = vld [vmem:[%s3 + $0x30] sm:$0xff]
    %v652 = vld [vmem:[%s3 + $0x38] sm:$0xff]
    %v661 = vunpack.c.l.b16 %v645
    %v662 = vunpack.c.h.b16 %v645
    %v663 = vunpack.c.l.b16 %v646
    %v664 = vunpack.c.h.b16 %v646
    %v665 = vunpack.c.l.b16 %v647
    %v666 = vunpack.c.h.b16 %v647
    %v667 = vunpack.c.l.b16 %v648
    %v668 = vunpack.c.h.b16 %v648
    %v669 = vunpack.c.l.b16 %v649
    %v670 = vunpack.c.h.b16 %v649
    %v671 = vunpack.c.l.b16 %v650
    %v672 = vunpack.c.h.b16 %v650
    %v673 = vunpack.c.l.b16 %v651
    %v674 = vunpack.c.h.b16 %v651
    %v675 = vunpack.c.l.b16 %v652
    %v676 = vunpack.c.h.b16 %v652
    %v677 = vpack.c.b16 %v663, %v661
    %v678 = vpack.c.b16 %v664, %v662
    %v679 = vpack.c.b16 %v667, %v665
    %v680 = vpack.c.b16 %v668, %v666
    %v681 = vpack.c.b16 %v671, %v669
    %v682 = vpack.c.b16 %v672, %v670
    %v683 = vpack.c.b16 %v675, %v673
    %v684 = vpack.c.b16 %v676, %v674
    %v694 = vsel %vm56, %v643, 0
    %v697 = vsel %vm56, %v644, 0
    %699 = vmatprep.subr.bf16.mxu0 %v678
    %700 = vmatpush1.bf16.msra.mxu0 %v677
    %701 = vmatprep.subr.bf16.mxu0 %v680
    %702 = vmatpush1.bf16.msra.mxu0 %v679
    %703 = vmatprep.subr.bf16.mxu0 %v682
    %704 = vmatpush1.bf16.msra.mxu0 %v681
    %705 = vmatprep.subr.bf16.mxu0 %v684
    %706 = vmatpush1.bf16.msra.mxu0 %v683
    %707 = vmatprep.subr.bf16.mxu0 0
    %708 = vmatpush1.bf16.msra.mxu0 0
    %709 = vmatprep.subr.bf16.mxu0 0
    %710 = vmatpush1.bf16.msra.mxu0 0
    %711 = vmatprep.subr.bf16.mxu0 0
    %712 = vmatpush1.bf16.msra.mxu0 0
    %713 = vmatprep.subr.bf16.mxu0 0
    %714 = vmatpush1.bf16.msra.mxu0 0
    %715 = vmatprep.subr.bf16.mxu0 0
    %716 = vmatpush1.bf16.msra.mxu0 0
    %717 = vmatprep.subr.bf16.mxu0 0
    %718 = vmatpush1.bf16.msra.mxu0 0
    %719 = vmatprep.subr.bf16.mxu0 0
    %720 = vmatpush1.bf16.msra.mxu0 0
    %721 = vmatprep.subr.bf16.mxu0 0
    %722 = vmatpush1.bf16.msra.mxu0 0
    %723 = vmatprep.subr.bf16.mxu0 0
    %724 = vmatpush1.bf16.msra.mxu0 0
    %725 = vmatprep.subr.bf16.mxu0 0
    %726 = vmatpush1.bf16.msra.mxu0 0
    %727 = vmatprep.subr.bf16.mxu0 0
    %728 = vmatpush1.bf16.msra.mxu0 0
    %729 = vmatprep.subr.bf16.mxu0 0
    %730 = vmatpush1.bf16.msra.mxu0 0
    %731 = vmatprep.mubr.bf16.mxu0 0
    %732 = vmatmul.mubr.bf16.gmra.mrb[0].mxu0 %v694
    %v733 = vpop.f32.mrb[0].mxu0
    %v734 = vadd.f32 0.0, %v733
    %v735 = vpop.f32.mrb[0].mxu0
    %v736 = vadd.f32 0.0, %v735
    %v737 = vpop.f32.mrb[0].mxu0
    %v738 = vadd.f32 0.0, %v737
    %v739 = vpop.f32.mrb[0].mxu0
    %v740 = vadd.f32 0.0, %v739
    %741 = vmatprep.mubr.bf16.mxu0 0
    %742 = vmatmul.mubr.bf16.gmra.mrb[0].mxu0 %v697
    %v743 = vpop.f32.mrb[0].mxu0
    %v744 = vadd.f32 0.0, %v743
    %v745 = vpop.f32.mrb[0].mxu0
    %v746 = vadd.f32 0.0, %v745
    %v747 = vpop.f32.mrb[0].mxu0
    %v748 = vadd.f32 0.0, %v747
    %v749 = vpop.f32.mrb[0].mxu0
    %v750 = vadd.f32 0.0, %v749
    %751 = vdwg.mxu0
    %v752 = vmul.f32 %v455, %v40
    %v753 = vmul.f32 %v460, %v41
    %v754 = vmul.f32 %v465, %v42
    %v755 = vmul.f32 %v470, %v43
    %v757 = vsel %vm56, %v455, 0
    %v760 = vsel %vm56, %v460, 0
    %v763 = vsel %vm56, %v465, 0
    %v766 = vsel %vm56, %v470, 0
    %768 = vmatprep.subr.mxu0 0.0
    %769 = vmatpush1.msra.mxu0 %v360
    %770 = vmatprep.subr.mxu0 0.0
    %771 = vmatpush1.msra.mxu0 %v361
    %772 = vmatprep.subr.mxu0 0.0
    %773 = vmatpush1.msra.mxu0 %v362
    %774 = vmatprep.subr.mxu0 0.0
    %775 = vmatpush1.msra.mxu0 %v363
    %776 = vmatprep.subr.mxu0 0.0
    %777 = vmatpush1.msra.mxu0 %v364
    %778 = vmatprep.subr.mxu0 0.0
    %779 = vmatpush1.msra.mxu0 %v365
    %780 = vmatprep.subr.mxu0 0.0
    %781 = vmatpush1.msra.mxu0 %v366
    %782 = vmatprep.subr.mxu0 0.0
    %783 = vmatpush1.msra.mxu0 %v367
    %784 = vmatprep.subr.mxu0 0.0
    %785 = vmatpush1.msra.mxu0 0.0
    %786 = vmatprep.subr.mxu0 0.0
    %787 = vmatpush1.msra.mxu0 0.0
    %788 = vmatprep.subr.mxu0 0.0
    %789 = vmatpush1.msra.mxu0 0.0
    %790 = vmatprep.subr.mxu0 0.0
    %791 = vmatpush1.msra.mxu0 0.0
    %792 = vmatprep.subr.mxu0 0.0
    %793 = vmatpush1.msra.mxu0 0.0
    %794 = vmatprep.subr.mxu0 0.0
    %795 = vmatpush1.msra.mxu0 0.0
    %796 = vmatprep.subr.mxu0 0.0
    %797 = vmatpush1.msra.mxu0 0.0
    %798 = vmatprep.subr.mxu0 0.0
    %799 = vmatpush1.msra.mxu0 0.0
    %800 = vmatprep.subr.mxu0 0.0
    %801 = vmatpush1.msra.mxu0 0.0
    %802 = vmatprep.subr.mxu0 0.0
    %803 = vmatpush1.msra.mxu0 0.0
    %804 = vmatprep.subr.mxu0 0.0
    %805 = vmatpush1.msra.mxu0 0.0
    %806 = vmatprep.subr.mxu0 0.0
    %807 = vmatpush1.msra.mxu0 0.0
    %808 = vmatprep.subr.mxu0 0.0
    %809 = vmatpush1.msra.mxu0 0.0
    %810 = vmatprep.subr.mxu0 0.0
    %811 = vmatpush1.msra.mxu0 0.0
    %812 = vmatprep.subr.mxu0 0.0
    %813 = vmatpush1.msra.mxu0 0.0
    %814 = vmatprep.subr.mxu0 0.0
    %815 = vmatpush1.msra.mxu0 0.0
    %816 = vmatprep.subr.mxu0 0.0
    %817 = vmatpush1.msra.mxu0 0.0
    %818 = vmatprep.subr.mxu0 0.0
    %819 = vmatpush1.msra.mxu0 0.0
    %820 = vmatprep.subr.mxu0 0.0
    %821 = vmatpush1.msra.mxu0 0.0
    %822 = vmatprep.subr.mxu0 0.0
    %823 = vmatpush1.msra.mxu0 0.0
    %824 = vmatprep.subr.mxu0 0.0
    %825 = vmatpush1.msra.mxu0 0.0
    %826 = vmatprep.subr.mxu0 0.0
    %827 = vmatpush1.msra.mxu0 0.0
    %828 = vmatprep.subr.mxu0 0.0
    %829 = vmatpush1.msra.mxu0 0.0
    %830 = vmatprep.subr.mxu0 0.0
    %831 = vmatpush1.msra.mxu0 0.0
    %832 = vmatprep.mubr.f32.mxu0 0.0
    %833 = vmatmul.mubr.f32.gmra.mrb[0].mxu0 %v757
    %v834 = vpop.f32.mrb[0].mxu0
    %v835 = vadd.f32 0.0, %v834
    %v836 = vpop.f32.mrb[0].mxu0
    %837 = vmatprep.mubr.f32.mxu0 0.0
    %838 = vmatmul.mubr.f32.gmra.mrb[0].mxu0 %v760
    %v839 = vpop.f32.mrb[0].mxu0
    %v840 = vadd.f32 0.0, %v839
    %v841 = vpop.f32.mrb[0].mxu0
    %842 = vmatprep.mubr.f32.mxu0 0.0
    %843 = vmatmul.mubr.f32.gmra.mrb[0].mxu0 %v763
    %v844 = vpop.f32.mrb[0].mxu0
    %v845 = vadd.f32 0.0, %v844
    %v846 = vpop.f32.mrb[0].mxu0
    %847 = vmatprep.mubr.f32.mxu0 0.0
    %848 = vmatmul.mubr.f32.gmra.mrb[0].mxu0 %v766
    %v849 = vpop.f32.mrb[0].mxu0
    %v850 = vadd.f32 0.0, %v849
    %v851 = vpop.f32.mrb[0].mxu0
    %852 = vdwg.mxu0
    %v853 = vmul.f32 %v835, %v44
    %v854 = vmul.f32 %v840, %v45
    %v855 = vmul.f32 %v845, %v46
    %v856 = vmul.f32 %v850, %v47
    %v857 = vadd.f32 %v752, %v853
    %v858 = vadd.f32 %v753, %v854
    %v859 = vadd.f32 %v754, %v855
    %v860 = vadd.f32 %v755, %v856
    %v861 = vmul.f32 %v540, %v40
    %v862 = vmul.f32 %v545, %v41
    %v863 = vmul.f32 %v550, %v42
    %v864 = vmul.f32 %v555, %v43
    %v866 = vsel %vm56, %v540, 0
    %v869 = vsel %vm56, %v545, 0
    %v872 = vsel %vm56, %v550, 0
    %v875 = vsel %vm56, %v555, 0
    %877 = vmatprep.subr.mxu0 0.0
    %878 = vmatpush1.msra.mxu0 %v360
    %879 = vmatprep.subr.mxu0 0.0
    %880 = vmatpush1.msra.mxu0 %v361
    %881 = vmatprep.subr.mxu0 0.0
    %882 = vmatpush1.msra.mxu0 %v362
    %883 = vmatprep.subr.mxu0 0.0
    %884 = vmatpush1.msra.mxu0 %v363
    %885 = vmatprep.subr.mxu0 0.0
    %886 = vmatpush1.msra.mxu0 %v364
    %887 = vmatprep.subr.mxu0 0.0
    %888 = vmatpush1.msra.mxu0 %v365
    %889 = vmatprep.subr.mxu0 0.0
    %890 = vmatpush1.msra.mxu0 %v366
    %891 = vmatprep.subr.mxu0 0.0
    %892 = vmatpush1.msra.mxu0 %v367
    %893 = vmatprep.subr.mxu0 0.0
    %894 = vmatpush1.msra.mxu0 0.0
    %895 = vmatprep.subr.mxu0 0.0
    %896 = vmatpush1.msra.mxu0 0.0
    %897 = vmatprep.subr.mxu0 0.0
    %898 = vmatpush1.msra.mxu0 0.0
    %899 = vmatprep.subr.mxu0 0.0
    %900 = vmatpush1.msra.mxu0 0.0
    %901 = vmatprep.subr.mxu0 0.0
    %902 = vmatpush1.msra.mxu0 0.0
    %903 = vmatprep.subr.mxu0 0.0
    %904 = vmatpush1.msra.mxu0 0.0
    %905 = vmatprep.subr.mxu0 0.0
    %906 = vmatpush1.msra.mxu0 0.0
    %907 = vmatprep.subr.mxu0 0.0
    %908 = vmatpush1.msra.mxu0 0.0
    %909 = vmatprep.subr.mxu0 0.0
    %910 = vmatpush1.msra.mxu0 0.0
    %911 = vmatprep.subr.mxu0 0.0
    %912 = vmatpush1.msra.mxu0 0.0
    %913 = vmatprep.subr.mxu0 0.0
    %914 = vmatpush1.msra.mxu0 0.0
    %915 = vmatprep.subr.mxu0 0.0
    %916 = vmatpush1.msra.mxu0 0.0
    %917 = vmatprep.subr.mxu0 0.0
    %918 = vmatpush1.msra.mxu0 0.0
    %919 = vmatprep.subr.mxu0 0.0
    %920 = vmatpush1.msra.mxu0 0.0
    %921 = vmatprep.subr.mxu0 0.0
    %922 = vmatpush1.msra.mxu0 0.0
    %923 = vmatprep.subr.mxu0 0.0
    %924 = vmatpush1.msra.mxu0 0.0
    %925 = vmatprep.subr.mxu0 0.0
    %926 = vmatpush1.msra.mxu0 0.0
    %927 = vmatprep.subr.mxu0 0.0
    %928 = vmatpush1.msra.mxu0 0.0
    %929 = vmatprep.subr.mxu0 0.0
    %930 = vmatpush1.msra.mxu0 0.0
    %931 = vmatprep.subr.mxu0 0.0
    %932 = vmatpush1.msra.mxu0 0.0
    %933 = vmatprep.subr.mxu0 0.0
    %934 = vmatpush1.msra.mxu0 0.0
    %935 = vmatprep.subr.mxu0 0.0
    %936 = vmatpush1.msra.mxu0 0.0
    %937 = vmatprep.subr.mxu0 0.0
    %938 = vmatpush1.msra.mxu0 0.0
    %939 = vmatprep.subr.mxu0 0.0
    %940 = vmatpush1.msra.mxu0 0.0
    %941 = vmatprep.mubr.f32.mxu0 0.0
    %942 = vmatmul.mubr.f32.gmra.mrb[0].mxu0 %v866
    %v943 = vpop.f32.mrb[0].mxu0
    %v944 = vadd.f32 0.0, %v943
    %v945 = vpop.f32.mrb[0].mxu0
    %946 = vmatprep.mubr.f32.mxu0 0.0
    %947 = vmatmul.mubr.f32.gmra.mrb[0].mxu0 %v869
    %v948 = vpop.f32.mrb[0].mxu0
    %v949 = vadd.f32 0.0, %v948
    %v950 = vpop.f32.mrb[0].mxu0
    %951 = vmatprep.mubr.f32.mxu0 0.0
    %952 = vmatmul.mubr.f32.gmra.mrb[0].mxu0 %v872
    %v953 = vpop.f32.mrb[0].mxu0
    %v954 = vadd.f32 0.0, %v953
    %v955 = vpop.f32.mrb[0].mxu0
    %956 = vmatprep.mubr.f32.mxu0 0.0
    %957 = vmatmul.mubr.f32.gmra.mrb[0].mxu0 %v875
    %v958 = vpop.f32.mrb[0].mxu0
    %v959 = vadd.f32 0.0, %v958
    %v960 = vpop.f32.mrb[0].mxu0
    %961 = vdwg.mxu0
    %v962 = vmul.f32 %v944, %v44
    %v963 = vmul.f32 %v949, %v45
    %v964 = vmul.f32 %v954, %v46
    %v965 = vmul.f32 %v959, %v47
    %v966 = vadd.f32 %v861, %v962
    %v967 = vadd.f32 %v862, %v963
    %v968 = vadd.f32 %v863, %v964
    %v969 = vadd.f32 %v864, %v965
    %v970 = vld [vmem:[%s7] sm:$0xff]
    %v971 = vld [vmem:[%s7 + $0x8] sm:$0xff]
    %v972 = vld [vmem:[%s7 + $0x10] sm:$0xff]
    %v973 = vld [vmem:[%s7 + $0x18] sm:$0xff]
    %v974 = vld [vmem:[%s7 + $0x20] sm:$0xff]
    %v975 = vld [vmem:[%s7 + $0x28] sm:$0xff]
    %v976 = vld [vmem:[%s7 + $0x30] sm:$0xff]
    %v977 = vld [vmem:[%s7 + $0x38] sm:$0xff]
    %v978 = vld [vmem:[%s7 + $0x40] sm:$0xff]
    %v979 = vld [vmem:[%s7 + $0x48] sm:$0xff]
    %v980 = vld [vmem:[%s7 + $0x50] sm:$0xff]
    %v981 = vld [vmem:[%s7 + $0x58] sm:$0xff]
    %v982 = vld [vmem:[%s7 + $0x60] sm:$0xff]
    %v983 = vld [vmem:[%s7 + $0x68] sm:$0xff]
    %v984 = vld [vmem:[%s7 + $0x70] sm:$0xff]
    %v985 = vld [vmem:[%s7 + $0x78] sm:$0xff]
    %v986 = vmul.f32 %v966, %v970
    %v987 = vmul.f32 %v967, %v971
    %v988 = vmul.f32 %v968, %v972
    %v989 = vmul.f32 %v969, %v973
    %v990 = vmul.f32 %v966, %v974
    %v991 = vmul.f32 %v967, %v975
    %v992 = vmul.f32 %v968, %v976
    %v993 = vmul.f32 %v969, %v977
    %v994 = vmul.f32 %v966, %v978
    %v995 = vmul.f32 %v967, %v979
    %v996 = vmul.f32 %v968, %v980
    %v997 = vmul.f32 %v969, %v981
    %v998 = vmul.f32 %v966, %v982
    %v999 = vmul.f32 %v967, %v983
    %v1000 = vmul.f32 %v968, %v984
    %v1001 = vmul.f32 %v969, %v985
    %v1002 = vmul.f32 %v625, %v970
    %v1003 = vmul.f32 %v630, %v971
    %v1004 = vmul.f32 %v635, %v972
    %v1005 = vmul.f32 %v640, %v973
    %v1006 = vmul.f32 %v625, %v974
    %v1007 = vmul.f32 %v630, %v975
    %v1008 = vmul.f32 %v635, %v976
    %v1009 = vmul.f32 %v640, %v977
    %v1010 = vmul.f32 %v625, %v978
    %v1011 = vmul.f32 %v630, %v979
    %v1012 = vmul.f32 %v635, %v980
    %v1013 = vmul.f32 %v640, %v981
    %v1014 = vmul.f32 %v625, %v982
    %v1015 = vmul.f32 %v630, %v983
    %v1016 = vmul.f32 %v635, %v984
    %v1017 = vmul.f32 %v640, %v985
    %v1019 = vsel %vm56, %v857, 0
    %v1022 = vsel %vm56, %v858, 0
    %v1025 = vsel %vm56, %v859, 0
    %v1028 = vsel %vm56, %v860, 0
    %v1031 = vsel %vm56, %v986, 0
    %v1034 = vsel %vm56, %v987, 0
    %v1037 = vsel %vm56, %v988, 0
    %v1040 = vsel %vm56, %v989, 0
    %v1043 = vsel %vm56, %v990, 0
    %v1046 = vsel %vm56, %v991, 0
    %v1049 = vsel %vm56, %v992, 0
    %v1052 = vsel %vm56, %v993, 0
    %v1055 = vsel %vm56, %v994, 0
    %v1058 = vsel %vm56, %v995, 0
    %v1061 = vsel %vm56, %v996, 0
    %v1064 = vsel %vm56, %v997, 0
    %v1067 = vsel %vm56, %v998, 0
    %v1070 = vsel %vm56, %v999, 0
    %v1073 = vsel %vm56, %v1000, 0
    %v1076 = vsel %vm56, %v1001, 0
    %1078 = vmatprep.subr.mxu0 0.0
    %1079 = vmatpush1.xpose.msra.mxu0 %v1031
    %1080 = vmatprep.subr.mxu0 0.0
    %1081 = vmatpush1.xpose.msra.mxu0 %v1034
    %1082 = vmatprep.subr.mxu0 0.0
    %1083 = vmatpush1.xpose.msra.mxu0 %v1037
    %1084 = vmatprep.subr.mxu0 0.0
    %1085 = vmatpush1.xpose.msra.mxu0 %v1040
    %1086 = vmatprep.subr.mxu0 0.0
    %1087 = vmatpush1.xpose.msra.mxu0 %v1043
    %1088 = vmatprep.subr.mxu0 0.0
    %1089 = vmatpush1.xpose.msra.mxu0 %v1046
    %1090 = vmatprep.subr.mxu0 0.0
    %1091 = vmatpush1.xpose.msra.mxu0 %v1049
    %1092 = vmatprep.subr.mxu0 0.0
    %1093 = vmatpush1.xpose.msra.mxu0 %v1052
    %1094 = vmatprep.subr.mxu0 0.0
    %1095 = vmatpush1.xpose.msra.mxu0 %v1055
    %1096 = vmatprep.subr.mxu0 0.0
    %1097 = vmatpush1.xpose.msra.mxu0 %v1058
    %1098 = vmatprep.subr.mxu0 0.0
    %1099 = vmatpush1.xpose.msra.mxu0 %v1061
    %1100 = vmatprep.subr.mxu0 0.0
    %1101 = vmatpush1.xpose.msra.mxu0 %v1064
    %1102 = vmatprep.subr.mxu0 0.0
    %1103 = vmatpush1.xpose.msra.mxu0 %v1067
    %1104 = vmatprep.subr.mxu0 0.0
    %1105 = vmatpush1.xpose.msra.mxu0 %v1070
    %1106 = vmatprep.subr.mxu0 0.0
    %1107 = vmatpush1.xpose.msra.mxu0 %v1073
    %1108 = vmatprep.subr.mxu0 0.0
    %1109 = vmatpush1.xpose.msra.mxu0 %v1076
    %1110 = vmatprep.subr.mxu0 0.0
    %1111 = vmatpush1.xpose.msra.mxu0 0.0
    %1112 = vmatprep.subr.mxu0 0.0
    %1113 = vmatpush1.xpose.msra.mxu0 0.0
    %1114 = vmatprep.subr.mxu0 0.0
    %1115 = vmatpush1.xpose.msra.mxu0 0.0
    %1116 = vmatprep.subr.mxu0 0.0
    %1117 = vmatpush1.xpose.msra.mxu0 0.0
    %1118 = vmatprep.subr.mxu0 0.0
    %1119 = vmatpush1.xpose.msra.mxu0 0.0
    %1120 = vmatprep.subr.mxu0 0.0
    %1121 = vmatpush1.xpose.msra.mxu0 0.0
    %1122 = vmatprep.subr.mxu0 0.0
    %1123 = vmatpush1.xpose.msra.mxu0 0.0
    %1124 = vmatprep.subr.mxu0 0.0
    %1125 = vmatpush1.xpose.msra.mxu0 0.0
    %1126 = vmatprep.subr.mxu0 0.0
    %1127 = vmatpush1.xpose.msra.mxu0 0.0
    %1128 = vmatprep.subr.mxu0 0.0
    %1129 = vmatpush1.xpose.msra.mxu0 0.0
    %1130 = vmatprep.subr.mxu0 0.0
    %1131 = vmatpush1.xpose.msra.mxu0 0.0
    %1132 = vmatprep.subr.mxu0 0.0
    %1133 = vmatpush1.xpose.msra.mxu0 0.0
    %1134 = vmatprep.subr.mxu0 0.0
    %1135 = vmatpush1.xpose.msra.mxu0 0.0
    %1136 = vmatprep.subr.mxu0 0.0
    %1137 = vmatpush1.xpose.msra.mxu0 0.0
    %1138 = vmatprep.subr.mxu0 0.0
    %1139 = vmatpush1.xpose.msra.mxu0 0.0
    %1140 = vmatprep.subr.mxu0 0.0
    %1141 = vmatpush1.xpose.msra.mxu0 0.0
    %1142 = vmatprep.mubr.f32.mxu0 0.0
    %1143 = vmatmul.mubr.f32.gmra.mrb[0].mxu0 %v1019
    %v1144 = vpop.f32.mrb[0].mxu0
    %v1145 = vadd.f32 0.0, %v1144
    %v1146 = vpop.f32.mrb[0].mxu0
    %1147 = vmatprep.mubr.f32.mxu0 0.0
    %1148 = vmatmul.mubr.f32.gmra.mrb[0].mxu0 %v1022
    %v1149 = vpop.f32.mrb[0].mxu0
    %v1150 = vadd.f32 0.0, %v1149
    %v1151 = vpop.f32.mrb[0].mxu0
    %1152 = vmatprep.mubr.f32.mxu0 0.0
    %1153 = vmatmul.mubr.f32.gmra.mrb[0].mxu0 %v1025
    %v1154 = vpop.f32.mrb[0].mxu0
    %v1155 = vadd.f32 0.0, %v1154
    %v1156 = vpop.f32.mrb[0].mxu0
    %1157 = vmatprep.mubr.f32.mxu0 0.0
    %1158 = vmatmul.mubr.f32.gmra.mrb[0].mxu0 %v1028
    %v1159 = vpop.f32.mrb[0].mxu0
    %v1160 = vadd.f32 0.0, %v1159
    %v1161 = vpop.f32.mrb[0].mxu0
    %1162 = vdwg.mxu0
    %v1163 = vmul.f32 %v1145, 0.25
    %v1164 = vmul.f32 %v1150, 0.25
    %v1165 = vmul.f32 %v1155, 0.25
    %v1166 = vmul.f32 %v1160, 0.25
    %v1167 = vld [vmem:[%s6] sm:$0xff]
    %v1168 = vld [vmem:[%s6 + $0x8] sm:$0xff]
    %v1169 = vld [vmem:[%s6 + $0x10] sm:$0xff]
    %v1170 = vld [vmem:[%s6 + $0x18] sm:$0xff]
    %v1171 = vadd.f32 %v1163, %v1167
    %v1172 = vadd.f32 %v1164, %v1168
    %v1173 = vadd.f32 %v1165, %v1169
    %v1174 = vadd.f32 %v1166, %v1170
    %1175 = vmax.xlane.f32.xlu0 %v1171
    %v1176 = vpop.xlane.xlu0 %1175
    %1177 = vmax.xlane.f32.xlu0 %v1172
    %v1178 = vpop.xlane.xlu0 %1177
    %1179 = vmax.xlane.f32.xlu0 %v1173
    %v1180 = vpop.xlane.xlu0 %1179
    %1181 = vmax.xlane.f32.xlu0 %v1174
    %v1182 = vpop.xlane.xlu0 %1181
    %v1183 = vsub.f32 %v1171, %v1176
    %v1184 = vsub.f32 %v1172, %v1178
    %v1185 = vsub.f32 %v1173, %v1180
    %v1186 = vsub.f32 %v1174, %v1182
    %v1187 = vmul.f32 %v1183, 1.442695
    %v1188 = vpow.pop %v1187
    %v1189 = vmul.f32 %v1184, 1.442695
    %v1190 = vpow.pop %v1189
    %v1191 = vmul.f32 %v1185, 1.442695
    %v1192 = vpow.pop %v1191
    %v1193 = vmul.f32 %v1186, 1.442695
    %v1194 = vpow.pop %v1193
    %1195 = vmatprep.subr.mxu0 0.0
    %1196 = vmatpush1.msra.mxu0 %v1002
    %1197 = vmatprep.subr.mxu0 0.0
    %1198 = vmatpush1.msra.mxu0 %v1003
    %1199 = vmatprep.subr.mxu0 0.0
    %1200 = vmatpush1.msra.mxu0 %v1004
    %1201 = vmatprep.subr.mxu0 0.0
    %1202 = vmatpush1.msra.mxu0 %v1005
    %1203 = vmatprep.subr.mxu0 0.0
    %1204 = vmatpush1.msra.mxu0 %v1006
    %1205 = vmatprep.subr.mxu0 0.0
    %1206 = vmatpush1.msra.mxu0 %v1007
    %1207 = vmatprep.subr.mxu0 0.0
    %1208 = vmatpush1.msra.mxu0 %v1008
    %1209 = vmatprep.subr.mxu0 0.0
    %1210 = vmatpush1.msra.mxu0 %v1009
    %1211 = vmatprep.subr.mxu0 0.0
    %1212 = vmatpush1.msra.mxu0 %v1010
    %1213 = vmatprep.subr.mxu0 0.0
    %1214 = vmatpush1.msra.mxu0 %v1011
    %1215 = vmatprep.subr.mxu0 0.0
    %1216 = vmatpush1.msra.mxu0 %v1012
    %1217 = vmatprep.subr.mxu0 0.0
    %1218 = vmatpush1.msra.mxu0 %v1013
    %1219 = vmatprep.subr.mxu0 0.0
    %1220 = vmatpush1.msra.mxu0 %v1014
    %1221 = vmatprep.subr.mxu0 0.0
    %1222 = vmatpush1.msra.mxu0 %v1015
    %1223 = vmatprep.subr.mxu0 0.0
    %1224 = vmatpush1.msra.mxu0 %v1016
    %1225 = vmatprep.subr.mxu0 0.0
    %1226 = vmatpush1.msra.mxu0 %v1017
    %1227 = vmatprep.subr.mxu0 0.0
    %1228 = vmatpush1.msra.mxu0 0.0
    %1229 = vmatprep.subr.mxu0 0.0
    %1230 = vmatpush1.msra.mxu0 0.0
    %1231 = vmatprep.subr.mxu0 0.0
    %1232 = vmatpush1.msra.mxu0 0.0
    %1233 = vmatprep.subr.mxu0 0.0
    %1234 = vmatpush1.msra.mxu0 0.0
    %1235 = vmatprep.subr.mxu0 0.0
    %1236 = vmatpush1.msra.mxu0 0.0
    %1237 = vmatprep.subr.mxu0 0.0
    %1238 = vmatpush1.msra.mxu0 0.0
    %1239 = vmatprep.subr.mxu0 0.0
    %1240 = vmatpush1.msra.mxu0 0.0
    %1241 = vmatprep.subr.mxu0 0.0
    %1242 = vmatpush1.msra.mxu0 0.0
    %1243 = vmatprep.subr.mxu0 0.0
    %1244 = vmatpush1.msra.mxu0 0.0
    %1245 = vmatprep.subr.mxu0 0.0
    %1246 = vmatpush1.msra.mxu0 0.0
    %1247 = vmatprep.subr.mxu0 0.0
    %1248 = vmatpush1.msra.mxu0 0.0
    %1249 = vmatprep.subr.mxu0 0.0
    %1250 = vmatpush1.msra.mxu0 0.0
    %1251 = vmatprep.subr.mxu0 0.0
    %1252 = vmatpush1.msra.mxu0 0.0
    %1253 = vmatprep.subr.mxu0 0.0
    %1254 = vmatpush1.msra.mxu0 0.0
    %1255 = vmatprep.subr.mxu0 0.0
    %1256 = vmatpush1.msra.mxu0 0.0
    %1257 = vmatprep.subr.mxu0 0.0
    %1258 = vmatpush1.msra.mxu0 0.0
    %1259 = vmatprep.mubr.f32.mxu0 0.0
    %1260 = vmatmul.mubr.f32.gmra.mrb[0].mxu0 %v1188
    %v1261 = vpop.f32.mrb[0].mxu0
    %v1262 = vadd.f32 0.0, %v1261
    %v1263 = vpop.f32.mrb[0].mxu0
    %1264 = vmatprep.mubr.f32.mxu0 0.0
    %1265 = vmatmul.mubr.f32.gmra.mrb[0].mxu0 %v1190
    %v1266 = vpop.f32.mrb[0].mxu0
    %v1267 = vadd.f32 0.0, %v1266
    %v1268 = vpop.f32.mrb[0].mxu0
    %1269 = vmatprep.mubr.f32.mxu0 0.0
    %1270 = vmatmul.mubr.f32.gmra.mrb[0].mxu0 %v1192
    %v1271 = vpop.f32.mrb[0].mxu0
    %v1272 = vadd.f32 0.0, %v1271
    %v1273 = vpop.f32.mrb[0].mxu0
    %1274 = vmatprep.mubr.f32.mxu0 0.0
    %1275 = vmatmul.mubr.f32.gmra.mrb[0].mxu0 %v1194
    %v1276 = vpop.f32.mrb[0].mxu0
    %v1277 = vadd.f32 0.0, %v1276
    %v1278 = vpop.f32.mrb[0].mxu0
    %1279 = vdwg.mxu0
    %1280 = vmatprep.subr.mxu0 0.0
    %1281 = vmatpush1.msra.mxu0 %v970
    %1282 = vmatprep.subr.mxu0 0.0
    %1283 = vmatpush1.msra.mxu0 %v971
    %1284 = vmatprep.subr.mxu0 0.0
    %1285 = vmatpush1.msra.mxu0 %v972
    %1286 = vmatprep.subr.mxu0 0.0
    %1287 = vmatpush1.msra.mxu0 %v973
    %1288 = vmatprep.subr.mxu0 0.0
    %1289 = vmatpush1.msra.mxu0 %v974
    %1290 = vmatprep.subr.mxu0 0.0
    %1291 = vmatpush1.msra.mxu0 %v975
    %1292 = vmatprep.subr.mxu0 0.0
    %1293 = vmatpush1.msra.mxu0 %v976
    %1294 = vmatprep.subr.mxu0 0.0
    %1295 = vmatpush1.msra.mxu0 %v977
    %1296 = vmatprep.subr.mxu0 0.0
    %1297 = vmatpush1.msra.mxu0 %v978
    %1298 = vmatprep.subr.mxu0 0.0
    %1299 = vmatpush1.msra.mxu0 %v979
    %1300 = vmatprep.subr.mxu0 0.0
    %1301 = vmatpush1.msra.mxu0 %v980
    %1302 = vmatprep.subr.mxu0 0.0
    %1303 = vmatpush1.msra.mxu0 %v981
    %1304 = vmatprep.subr.mxu0 0.0
    %1305 = vmatpush1.msra.mxu0 %v982
    %1306 = vmatprep.subr.mxu0 0.0
    %1307 = vmatpush1.msra.mxu0 %v983
    %1308 = vmatprep.subr.mxu0 0.0
    %1309 = vmatpush1.msra.mxu0 %v984
    %1310 = vmatprep.subr.mxu0 0.0
    %1311 = vmatpush1.msra.mxu0 %v985
    %1312 = vmatprep.subr.mxu0 0.0
    %1313 = vmatpush1.msra.mxu0 0.0
    %1314 = vmatprep.subr.mxu0 0.0
    %1315 = vmatpush1.msra.mxu0 0.0
    %1316 = vmatprep.subr.mxu0 0.0
    %1317 = vmatpush1.msra.mxu0 0.0
    %1318 = vmatprep.subr.mxu0 0.0
    %1319 = vmatpush1.msra.mxu0 0.0
    %1320 = vmatprep.subr.mxu0 0.0
    %1321 = vmatpush1.msra.mxu0 0.0
    %1322 = vmatprep.subr.mxu0 0.0
    %1323 = vmatpush1.msra.mxu0 0.0
    %1324 = vmatprep.subr.mxu0 0.0
    %1325 = vmatpush1.msra.mxu0 0.0
    %1326 = vmatprep.subr.mxu0 0.0
    %1327 = vmatpush1.msra.mxu0 0.0
    %1328 = vmatprep.subr.mxu0 0.0
    %1329 = vmatpush1.msra.mxu0 0.0
    %1330 = vmatprep.subr.mxu0 0.0
    %1331 = vmatpush1.msra.mxu0 0.0
    %1332 = vmatprep.subr.mxu0 0.0
    %1333 = vmatpush1.msra.mxu0 0.0
    %1334 = vmatprep.subr.mxu0 0.0
    %1335 = vmatpush1.msra.mxu0 0.0
    %1336 = vmatprep.subr.mxu0 0.0
    %1337 = vmatpush1.msra.mxu0 0.0
    %1338 = vmatprep.subr.mxu0 0.0
    %1339 = vmatpush1.msra.mxu0 0.0
    %1340 = vmatprep.subr.mxu0 0.0
    %1341 = vmatpush1.msra.mxu0 0.0
    %1342 = vmatprep.subr.mxu0 0.0
    %1343 = vmatpush1.msra.mxu0 0.0
    %1344 = vmatprep.mubr.f32.mxu0 0.0
    %1345 = vmatmul.mubr.f32.gmra.mrb[0].mxu0 %v1188
    %v1346 = vpop.f32.mrb[0].mxu0
    %v1347 = vadd.f32 0.0, %v1346
    %v1348 = vpop.f32.mrb[0].mxu0
    %1349 = vmatprep.mubr.f32.mxu0 0.0
    %1350 = vmatmul.mubr.f32.gmra.mrb[0].mxu0 %v1190
    %v1351 = vpop.f32.mrb[0].mxu0
    %v1352 = vadd.f32 0.0, %v1351
    %v1353 = vpop.f32.mrb[0].mxu0
    %1354 = vmatprep.mubr.f32.mxu0 0.0
    %1355 = vmatmul.mubr.f32.gmra.mrb[0].mxu0 %v1192
    %v1356 = vpop.f32.mrb[0].mxu0
    %v1357 = vadd.f32 0.0, %v1356
    %v1358 = vpop.f32.mrb[0].mxu0
    %1359 = vmatprep.mubr.f32.mxu0 0.0
    %1360 = vmatmul.mubr.f32.gmra.mrb[0].mxu0 %v1194
    %v1361 = vpop.f32.mrb[0].mxu0
    %v1362 = vadd.f32 0.0, %v1361
    %v1363 = vpop.f32.mrb[0].mxu0
    %1364 = vdwg.mxu0
    %v1365 = vrcp.pop %v1347
    %v1366 = vrcp.pop %v1352
    %v1367 = vrcp.pop %v1357
    %v1368 = vrcp.pop %v1362
    %v1369 = vmul.f32 %v1347, %v1365
    %v1370 = vmul.f32 %v1352, %v1366
    %v1371 = vmul.f32 %v1357, %v1367
    %v1372 = vmul.f32 %v1362, %v1368
    %v1373 = vsub.f32 2.0, %v1369
    %v1374 = vsub.f32 2.0, %v1370
    %v1375 = vsub.f32 2.0, %v1371
    %v1376 = vsub.f32 2.0, %v1372
    %v1377 = vmul.f32 %v1365, %v1373
    %v1378 = vmul.f32 %v1366, %v1374
    %v1379 = vmul.f32 %v1367, %v1375
    %v1380 = vmul.f32 %v1368, %v1376
    %v1381 = vmul.f32 %v1262, %v1377
    %v1382 = vmul.f32 %v1267, %v1378
    %v1383 = vmul.f32 %v1272, %v1379
    %v1384 = vmul.f32 %v1277, %v1380
    %v1385 = vmul.f32 %v734, 0.70710677
    %v1386 = vmul.f32 %v736, 0.70710677
    %v1387 = vmul.f32 %v738, 0.70710677
    %v1388 = vmul.f32 %v740, 0.70710677
    %v1389 = vmul.f32 %v744, 0.70710677
    %v1390 = vmul.f32 %v746, 0.70710677
    %v1391 = vmul.f32 %v748, 0.70710677
    %v1392 = vmul.f32 %v750, 0.70710677
    %v1393 = vand.u32 2147483647, %v1385
    %v1394 = vand.u32 2147483647, %v1386
    %v1395 = vand.u32 2147483647, %v1387
    %v1396 = vand.u32 2147483647, %v1388
    %v1397 = vand.u32 2147483647, %v1389
    %v1398 = vand.u32 2147483647, %v1390
    %v1399 = vand.u32 2147483647, %v1391
    %v1400 = vand.u32 2147483647, %v1392
    %vm1401 = vcmp.ge.f32.partialorder %v1385, 0.0
    %vm1402 = vcmp.ge.f32.partialorder %v1386, 0.0
    %vm1403 = vcmp.ge.f32.partialorder %v1387, 0.0
    %vm1404 = vcmp.ge.f32.partialorder %v1388, 0.0
    %vm1405 = vcmp.ge.f32.partialorder %v1389, 0.0
    %vm1406 = vcmp.ge.f32.partialorder %v1390, 0.0
    %vm1407 = vcmp.ge.f32.partialorder %v1391, 0.0
    %vm1408 = vcmp.ge.f32.partialorder %v1392, 0.0
    %v1409 = vsel %vm1401, 1.0, -1.0
    %v1410 = vsel %vm1402, 1.0, -1.0
    %v1411 = vsel %vm1403, 1.0, -1.0
    %v1412 = vsel %vm1404, 1.0, -1.0
    %v1413 = vsel %vm1405, 1.0, -1.0
    %v1414 = vsel %vm1406, 1.0, -1.0
    %v1415 = vsel %vm1407, 1.0, -1.0
    %v1416 = vsel %vm1408, 1.0, -1.0
    %v1417 = vmul.f32 %v1393, 0.3275911
    %v1418 = vmul.f32 %v1394, 0.3275911
    %v1419 = vmul.f32 %v1395, 0.3275911
    %v1420 = vmul.f32 %v1396, 0.3275911
    %v1421 = vmul.f32 %v1397, 0.3275911
    %v1422 = vmul.f32 %v1398, 0.3275911
    %v1423 = vmul.f32 %v1399, 0.3275911
    %v1424 = vmul.f32 %v1400, 0.3275911
    %v1425 = vadd.f32 %v1417, 1.0
    %v1426 = vadd.f32 %v1418, 1.0
    %v1427 = vadd.f32 %v1419, 1.0
    %v1428 = vadd.f32 %v1420, 1.0
    %v1429 = vadd.f32 %v1421, 1.0
    %v1430 = vadd.f32 %v1422, 1.0
    %v1431 = vadd.f32 %v1423, 1.0
    %v1432 = vadd.f32 %v1424, 1.0
    %v1433 = vrcp.pop %v1425
    %v1434 = vmul.f32 1.0, %v1433
    %v1435 = vrcp.pop %v1426
    %v1436 = vmul.f32 1.0, %v1435
    %v1437 = vrcp.pop %v1427
    %v1438 = vmul.f32 1.0, %v1437
    %v1439 = vrcp.pop %v1428
    %v1440 = vmul.f32 1.0, %v1439
    %v1441 = vrcp.pop %v1429
    %v1442 = vmul.f32 1.0, %v1441
    %v1443 = vrcp.pop %v1430
    %v1444 = vmul.f32 1.0, %v1443
    %v1445 = vrcp.pop %v1431
    %v1446 = vmul.f32 1.0, %v1445
    %v1447 = vrcp.pop %v1432
    %v1448 = vmul.f32 1.0, %v1447
    %v1449 = vmul.f32 %v1434, 1.0614054
    %v1450 = vmul.f32 %v1436, 1.0614054
    %v1451 = vmul.f32 %v1438, 1.0614054
    %v1452 = vmul.f32 %v1440, 1.0614054
    %v1453 = vmul.f32 %v1442, 1.0614054
    %v1454 = vmul.f32 %v1444, 1.0614054
    %v1455 = vmul.f32 %v1446, 1.0614054
    %v1456 = vmul.f32 %v1448, 1.0614054
    %v1457 = vsub.f32 %v1449, 1.4531521
    %v1458 = vsub.f32 %v1450, 1.4531521
    %v1459 = vsub.f32 %v1451, 1.4531521
    %v1460 = vsub.f32 %v1452, 1.4531521
    %v1461 = vsub.f32 %v1453, 1.4531521
    %v1462 = vsub.f32 %v1454, 1.4531521
    %v1463 = vsub.f32 %v1455, 1.4531521
    %v1464 = vsub.f32 %v1456, 1.4531521
    %v1465 = vmul.f32 %v1457, %v1434
    %v1466 = vmul.f32 %v1458, %v1436
    %v1467 = vmul.f32 %v1459, %v1438
    %v1468 = vmul.f32 %v1460, %v1440
    %v1469 = vmul.f32 %v1461, %v1442
    %v1470 = vmul.f32 %v1462, %v1444
    %v1471 = vmul.f32 %v1463, %v1446
    %v1472 = vmul.f32 %v1464, %v1448
    %v1473 = vadd.f32 %v1465, 1.4214138
    %v1474 = vadd.f32 %v1466, 1.4214138
    %v1475 = vadd.f32 %v1467, 1.4214138
    %v1476 = vadd.f32 %v1468, 1.4214138
    %v1477 = vadd.f32 %v1469, 1.4214138
    %v1478 = vadd.f32 %v1470, 1.4214138
    %v1479 = vadd.f32 %v1471, 1.4214138
    %v1480 = vadd.f32 %v1472, 1.4214138
    %v1481 = vmul.f32 %v1473, %v1434
    %v1482 = vmul.f32 %v1474, %v1436
    %v1483 = vmul.f32 %v1475, %v1438
    %v1484 = vmul.f32 %v1476, %v1440
    %v1485 = vmul.f32 %v1477, %v1442
    %v1486 = vmul.f32 %v1478, %v1444
    %v1487 = vmul.f32 %v1479, %v1446
    %v1488 = vmul.f32 %v1480, %v1448
    %v1489 = vsub.f32 %v1481, 0.28449672
    %v1490 = vsub.f32 %v1482, 0.28449672
    %v1491 = vsub.f32 %v1483, 0.28449672
    %v1492 = vsub.f32 %v1484, 0.28449672
    %v1493 = vsub.f32 %v1485, 0.28449672
    %v1494 = vsub.f32 %v1486, 0.28449672
    %v1495 = vsub.f32 %v1487, 0.28449672
    %v1496 = vsub.f32 %v1488, 0.28449672
    %v1497 = vmul.f32 %v1489, %v1434
    %v1498 = vmul.f32 %v1490, %v1436
    %v1499 = vmul.f32 %v1491, %v1438
    %v1500 = vmul.f32 %v1492, %v1440
    %v1501 = vmul.f32 %v1493, %v1442
    %v1502 = vmul.f32 %v1494, %v1444
    %v1503 = vmul.f32 %v1495, %v1446
    %v1504 = vmul.f32 %v1496, %v1448
    %v1505 = vadd.f32 %v1497, 0.2548296
    %v1506 = vadd.f32 %v1498, 0.2548296
    %v1507 = vadd.f32 %v1499, 0.2548296
    %v1508 = vadd.f32 %v1500, 0.2548296
    %v1509 = vadd.f32 %v1501, 0.2548296
    %v1510 = vadd.f32 %v1502, 0.2548296
    %v1511 = vadd.f32 %v1503, 0.2548296
    %v1512 = vadd.f32 %v1504, 0.2548296
    %v1513 = vmul.f32 %v1505, %v1434
    %v1514 = vmul.f32 %v1506, %v1436
    %v1515 = vmul.f32 %v1507, %v1438
    %v1516 = vmul.f32 %v1508, %v1440
    %v1517 = vmul.f32 %v1509, %v1442
    %v1518 = vmul.f32 %v1510, %v1444
    %v1519 = vmul.f32 %v1511, %v1446
    %v1520 = vmul.f32 %v1512, %v1448
    %v1521 = vsub.f32 0.0, %v1393
    %v1522 = vsub.f32 0.0, %v1394
    %v1523 = vsub.f32 0.0, %v1395
    %v1524 = vsub.f32 0.0, %v1396
    %v1525 = vsub.f32 0.0, %v1397
    %v1526 = vsub.f32 0.0, %v1398
    %v1527 = vsub.f32 0.0, %v1399
    %v1528 = vsub.f32 0.0, %v1400
    %v1529 = vmul.f32 %v1521, %v1393
    %v1530 = vmul.f32 %v1522, %v1394
    %v1531 = vmul.f32 %v1523, %v1395
    %v1532 = vmul.f32 %v1524, %v1396
    %v1533 = vmul.f32 %v1525, %v1397
    %v1534 = vmul.f32 %v1526, %v1398
    %v1535 = vmul.f32 %v1527, %v1399
    %v1536 = vmul.f32 %v1528, %v1400
    %v1537 = vmul.f32 %v1529, 1.442695
    %v1538 = vpow.pop %v1537
    %v1539 = vmul.f32 %v1530, 1.442695
    %v1540 = vpow.pop %v1539
    %v1541 = vmul.f32 %v1531, 1.442695
    %v1542 = vpow.pop %v1541
    %v1543 = vmul.f32 %v1532, 1.442695
    %v1544 = vpow.pop %v1543
    %v1545 = vmul.f32 %v1533, 1.442695
    %v1546 = vpow.pop %v1545
    %v1547 = vmul.f32 %v1534, 1.442695
    %v1548 = vpow.pop %v1547
    %v1549 = vmul.f32 %v1535, 1.442695
    %v1550 = vpow.pop %v1549
    %v1551 = vmul.f32 %v1536, 1.442695
    %v1552 = vpow.pop %v1551
    %v1553 = vmul.f32 %v1513, %v1538
    %v1554 = vmul.f32 %v1514, %v1540
    %v1555 = vmul.f32 %v1515, %v1542
    %v1556 = vmul.f32 %v1516, %v1544
    %v1557 = vmul.f32 %v1517, %v1546
    %v1558 = vmul.f32 %v1518, %v1548
    %v1559 = vmul.f32 %v1519, %v1550
    %v1560 = vmul.f32 %v1520, %v1552
    %v1561 = vsub.f32 1.0, %v1553
    %v1562 = vsub.f32 1.0, %v1554
    %v1563 = vsub.f32 1.0, %v1555
    %v1564 = vsub.f32 1.0, %v1556
    %v1565 = vsub.f32 1.0, %v1557
    %v1566 = vsub.f32 1.0, %v1558
    %v1567 = vsub.f32 1.0, %v1559
    %v1568 = vsub.f32 1.0, %v1560
    %v1569 = vmul.f32 %v1409, %v1561
    %v1570 = vmul.f32 %v1410, %v1562
    %v1571 = vmul.f32 %v1411, %v1563
    %v1572 = vmul.f32 %v1412, %v1564
    %v1573 = vmul.f32 %v1413, %v1565
    %v1574 = vmul.f32 %v1414, %v1566
    %v1575 = vmul.f32 %v1415, %v1567
    %v1576 = vmul.f32 %v1416, %v1568
    %v1577 = vmul.f32 %v734, 0.5
    %v1578 = vmul.f32 %v736, 0.5
    %v1579 = vmul.f32 %v738, 0.5
    %v1580 = vmul.f32 %v740, 0.5
    %v1581 = vmul.f32 %v744, 0.5
    %v1582 = vmul.f32 %v746, 0.5
    %v1583 = vmul.f32 %v748, 0.5
    %v1584 = vmul.f32 %v750, 0.5
    %v1585 = vadd.f32 %v1569, 1.0
    %v1586 = vadd.f32 %v1570, 1.0
    %v1587 = vadd.f32 %v1571, 1.0
    %v1588 = vadd.f32 %v1572, 1.0
    %v1589 = vadd.f32 %v1573, 1.0
    %v1590 = vadd.f32 %v1574, 1.0
    %v1591 = vadd.f32 %v1575, 1.0
    %v1592 = vadd.f32 %v1576, 1.0
    %v1593 = vmul.f32 %v1577, %v1585
    %v1594 = vmul.f32 %v1578, %v1586
    %v1595 = vmul.f32 %v1579, %v1587
    %v1596 = vmul.f32 %v1580, %v1588
    %v1597 = vmul.f32 %v1581, %v1589
    %v1598 = vmul.f32 %v1582, %v1590
    %v1599 = vmul.f32 %v1583, %v1591
    %v1600 = vmul.f32 %v1584, %v1592
    %v1601 = vpack.c.bf16 %v1595, %v1593
    %v1602 = vpack.c.bf16 %v1596, %v1594
    %v1603 = vpack.c.bf16 %v1599, %v1597
    %v1604 = vpack.c.bf16 %v1600, %v1598
    %v1605 = vld [vmem:[%s4] sm:$0xf]
    %v1606 = vld [vmem:[%s4 + $0x4] sm:$0xf]
    %v1607 = vld [vmem:[%s4 + $0x8] sm:$0xf]
    %v1608 = vld [vmem:[%s4 + $0xc] sm:$0xf]
    %v1609 = vld [vmem:[%s4 + $0x10] sm:$0xf]
    %v1610 = vld [vmem:[%s4 + $0x14] sm:$0xf]
    %v1611 = vld [vmem:[%s4 + $0x18] sm:$0xf]
    %v1612 = vld [vmem:[%s4 + $0x1c] sm:$0xf]
    %v1613 = vld [vmem:[%s4 + $0x20] sm:$0xf]
    %v1614 = vld [vmem:[%s4 + $0x24] sm:$0xf]
    %v1615 = vld [vmem:[%s4 + $0x28] sm:$0xf]
    %v1616 = vld [vmem:[%s4 + $0x2c] sm:$0xf]
    %v1617 = vld [vmem:[%s4 + $0x30] sm:$0xf]
    %v1618 = vld [vmem:[%s4 + $0x34] sm:$0xf]
    %v1619 = vld [vmem:[%s4 + $0x38] sm:$0xf]
    %v1620 = vld [vmem:[%s4 + $0x3c] sm:$0xf]
    %v1621 = vld [vmem:[%s4 + $0x40] sm:$0xf]
    %v1622 = vld [vmem:[%s4 + $0x44] sm:$0xf]
    %v1623 = vld [vmem:[%s4 + $0x48] sm:$0xf]
    %v1624 = vld [vmem:[%s4 + $0x4c] sm:$0xf]
    %v1625 = vld [vmem:[%s4 + $0x50] sm:$0xf]
    %v1626 = vld [vmem:[%s4 + $0x54] sm:$0xf]
    %v1627 = vld [vmem:[%s4 + $0x58] sm:$0xf]
    %v1628 = vld [vmem:[%s4 + $0x5c] sm:$0xf]
    %v1629 = vld [vmem:[%s4 + $0x60] sm:$0xf]
    %v1630 = vld [vmem:[%s4 + $0x64] sm:$0xf]
    %v1631 = vld [vmem:[%s4 + $0x68] sm:$0xf]
    %v1632 = vld [vmem:[%s4 + $0x6c] sm:$0xf]
    %v1633 = vld [vmem:[%s4 + $0x70] sm:$0xf]
    %v1634 = vld [vmem:[%s4 + $0x74] sm:$0xf]
    %v1635 = vld [vmem:[%s4 + $0x78] sm:$0xf]
    %v1636 = vld [vmem:[%s4 + $0x7c] sm:$0xf]
    %v1669 = vunpack.c.l.b16 %v1605
    %v1670 = vunpack.c.l.b16 %v1606
    %v1671 = vunpack.c.l.b16 %v1607
    %v1672 = vunpack.c.l.b16 %v1608
    %v1673 = vunpack.c.l.b16 %v1609
    %v1674 = vunpack.c.l.b16 %v1610
    %v1675 = vunpack.c.l.b16 %v1611
    %v1676 = vunpack.c.l.b16 %v1612
    %v1677 = vunpack.c.l.b16 %v1613
    %v1678 = vunpack.c.l.b16 %v1614
    %v1679 = vunpack.c.l.b16 %v1615
    %v1680 = vunpack.c.l.b16 %v1616
    %v1681 = vunpack.c.l.b16 %v1617
    %v1682 = vunpack.c.l.b16 %v1618
    %v1683 = vunpack.c.l.b16 %v1619
    %v1684 = vunpack.c.l.b16 %v1620
    %v1685 = vunpack.c.l.b16 %v1621
    %v1686 = vunpack.c.l.b16 %v1622
    %v1687 = vunpack.c.l.b16 %v1623
    %v1688 = vunpack.c.l.b16 %v1624
    %v1689 = vunpack.c.l.b16 %v1625
    %v1690 = vunpack.c.l.b16 %v1626
    %v1691 = vunpack.c.l.b16 %v1627
    %v1692 = vunpack.c.l.b16 %v1628
    %v1693 = vunpack.c.l.b16 %v1629
    %v1694 = vunpack.c.l.b16 %v1630
    %v1695 = vunpack.c.l.b16 %v1631
    %v1696 = vunpack.c.l.b16 %v1632
    %v1697 = vunpack.c.l.b16 %v1633
    %v1698 = vunpack.c.l.b16 %v1634
    %v1699 = vunpack.c.l.b16 %v1635
    %v1700 = vunpack.c.l.b16 %v1636
    %v1701 = vpack.c.b16 %v1670, %v1669
    %v1702 = vpack.c.b16 %v1672, %v1671
    %v1703 = vpack.c.b16 %v1674, %v1673
    %v1704 = vpack.c.b16 %v1676, %v1675
    %v1705 = vpack.c.b16 %v1678, %v1677
    %v1706 = vpack.c.b16 %v1680, %v1679
    %v1707 = vpack.c.b16 %v1682, %v1681
    %v1708 = vpack.c.b16 %v1684, %v1683
    %v1709 = vpack.c.b16 %v1686, %v1685
    %v1710 = vpack.c.b16 %v1688, %v1687
    %v1711 = vpack.c.b16 %v1690, %v1689
    %v1712 = vpack.c.b16 %v1692, %v1691
    %v1713 = vpack.c.b16 %v1694, %v1693
    %v1714 = vpack.c.b16 %v1696, %v1695
    %v1715 = vpack.c.b16 %v1698, %v1697
    %v1716 = vpack.c.b16 %v1700, %v1699
    %1733 = vmatprep.subr.bf16.mxu0 0
    %1734 = vmatpush1.bf16.msra.mxu0 %v1701
    %1735 = vmatprep.subr.bf16.mxu0 0
    %1736 = vmatpush1.bf16.msra.mxu0 %v1702
    %1737 = vmatprep.subr.bf16.mxu0 0
    %1738 = vmatpush1.bf16.msra.mxu0 %v1703
    %1739 = vmatprep.subr.bf16.mxu0 0
    %1740 = vmatpush1.bf16.msra.mxu0 %v1704
    %1741 = vmatprep.subr.bf16.mxu0 0
    %1742 = vmatpush1.bf16.msra.mxu0 %v1705
    %1743 = vmatprep.subr.bf16.mxu0 0
    %1744 = vmatpush1.bf16.msra.mxu0 %v1706
    %1745 = vmatprep.subr.bf16.mxu0 0
    %1746 = vmatpush1.bf16.msra.mxu0 %v1707
    %1747 = vmatprep.subr.bf16.mxu0 0
    %1748 = vmatpush1.bf16.msra.mxu0 %v1708
    %1749 = vmatprep.subr.bf16.mxu0 0
    %1750 = vmatpush1.bf16.msra.mxu0 %v1709
    %1751 = vmatprep.subr.bf16.mxu0 0
    %1752 = vmatpush1.bf16.msra.mxu0 %v1710
    %1753 = vmatprep.subr.bf16.mxu0 0
    %1754 = vmatpush1.bf16.msra.mxu0 %v1711
    %1755 = vmatprep.subr.bf16.mxu0 0
    %1756 = vmatpush1.bf16.msra.mxu0 %v1712
    %1757 = vmatprep.subr.bf16.mxu0 0
    %1758 = vmatpush1.bf16.msra.mxu0 %v1713
    %1759 = vmatprep.subr.bf16.mxu0 0
    %1760 = vmatpush1.bf16.msra.mxu0 %v1714
    %1761 = vmatprep.subr.bf16.mxu0 0
    %1762 = vmatpush1.bf16.msra.mxu0 %v1715
    %1763 = vmatprep.subr.bf16.mxu0 0
    %1764 = vmatpush1.bf16.msra.mxu0 %v1716
    %1765 = vmatprep.mubr.bf16.mxu0 %v1602
    %1766 = vmatmul.mubr.bf16.gmra.mrb[0].mxu0 %v1601
    %v1767 = vpop.f32.mrb[0].mxu0
    %v1768 = vadd.f32 0.0, %v1767
    %v1769 = vpop.f32.mrb[0].mxu0
    %v1770 = vpop.f32.mrb[0].mxu0
    %v1771 = vadd.f32 0.0, %v1770
    %v1772 = vpop.f32.mrb[0].mxu0
    %1773 = vmatprep.mubr.bf16.mxu0 %v1604
    %1774 = vmatmul.mubr.bf16.gmra.mrb[0].mxu0 %v1603
    %v1775 = vpop.f32.mrb[0].mxu0
    %v1776 = vadd.f32 0.0, %v1775
    %v1777 = vpop.f32.mrb[0].mxu0
    %v1778 = vpop.f32.mrb[0].mxu0
    %v1779 = vadd.f32 0.0, %v1778
    %v1780 = vpop.f32.mrb[0].mxu0
    %1781 = vdwg.mxu0
    %v1783 = vsel %vm56, %v1381, 0
    %v1786 = vsel %vm56, %v1382, 0
    %v1789 = vsel %vm56, %v1383, 0
    %v1792 = vsel %vm56, %v1384, 0
    %1794 = vmatprep.subr.mxu0 0.0
    %1795 = vmatpush1.msra.mxu0 %v368
    %1796 = vmatprep.subr.mxu0 0.0
    %1797 = vmatpush1.msra.mxu0 %v369
    %1798 = vmatprep.subr.mxu0 0.0
    %1799 = vmatpush1.msra.mxu0 %v370
    %1800 = vmatprep.subr.mxu0 0.0
    %1801 = vmatpush1.msra.mxu0 %v371
    %1802 = vmatprep.subr.mxu0 0.0
    %1803 = vmatpush1.msra.mxu0 %v372
    %1804 = vmatprep.subr.mxu0 0.0
    %1805 = vmatpush1.msra.mxu0 %v373
    %1806 = vmatprep.subr.mxu0 0.0
    %1807 = vmatpush1.msra.mxu0 %v374
    %1808 = vmatprep.subr.mxu0 0.0
    %1809 = vmatpush1.msra.mxu0 %v375
    %1810 = vmatprep.subr.mxu0 0.0
    %1811 = vmatpush1.msra.mxu0 0.0
    %1812 = vmatprep.subr.mxu0 0.0
    %1813 = vmatpush1.msra.mxu0 0.0
    %1814 = vmatprep.subr.mxu0 0.0
    %1815 = vmatpush1.msra.mxu0 0.0
    %1816 = vmatprep.subr.mxu0 0.0
    %1817 = vmatpush1.msra.mxu0 0.0
    %1818 = vmatprep.subr.mxu0 0.0
    %1819 = vmatpush1.msra.mxu0 0.0
    %1820 = vmatprep.subr.mxu0 0.0
    %1821 = vmatpush1.msra.mxu0 0.0
    %1822 = vmatprep.subr.mxu0 0.0
    %1823 = vmatpush1.msra.mxu0 0.0
    %1824 = vmatprep.subr.mxu0 0.0
    %1825 = vmatpush1.msra.mxu0 0.0
    %1826 = vmatprep.subr.mxu0 0.0
    %1827 = vmatpush1.msra.mxu0 0.0
    %1828 = vmatprep.subr.mxu0 0.0
    %1829 = vmatpush1.msra.mxu0 0.0
    %1830 = vmatprep.subr.mxu0 0.0
    %1831 = vmatpush1.msra.mxu0 0.0
    %1832 = vmatprep.subr.mxu0 0.0
    %1833 = vmatpush1.msra.mxu0 0.0
    %1834 = vmatprep.subr.mxu0 0.0
    %1835 = vmatpush1.msra.mxu0 0.0
    %1836 = vmatprep.subr.mxu0 0.0
    %1837 = vmatpush1.msra.mxu0 0.0
    %1838 = vmatprep.subr.mxu0 0.0
    %1839 = vmatpush1.msra.mxu0 0.0
    %1840 = vmatprep.subr.mxu0 0.0
    %1841 = vmatpush1.msra.mxu0 0.0
    %1842 = vmatprep.subr.mxu0 0.0
    %1843 = vmatpush1.msra.mxu0 0.0
    %1844 = vmatprep.subr.mxu0 0.0
    %1845 = vmatpush1.msra.mxu0 0.0
    %1846 = vmatprep.subr.mxu0 0.0
    %1847 = vmatpush1.msra.mxu0 0.0
    %1848 = vmatprep.subr.mxu0 0.0
    %1849 = vmatpush1.msra.mxu0 0.0
    %1850 = vmatprep.subr.mxu0 0.0
    %1851 = vmatpush1.msra.mxu0 0.0
    %1852 = vmatprep.subr.mxu0 0.0
    %1853 = vmatpush1.msra.mxu0 0.0
    %1854 = vmatprep.subr.mxu0 0.0
    %1855 = vmatpush1.msra.mxu0 0.0
    %1856 = vmatprep.subr.mxu0 0.0
    %1857 = vmatpush1.msra.mxu0 0.0
    %1858 = vmatprep.mubr.f32.mxu0 0.0
    %1859 = vmatmul.mubr.f32.gmra.mrb[0].mxu0 %v1783
    %v1860 = vpop.f32.mrb[0].mxu0
    %v1861 = vadd.f32 %v1768, %v1860
    %v1862 = vpop.f32.mrb[0].mxu0
    %1863 = vmatprep.mubr.f32.mxu0 0.0
    %1864 = vmatmul.mubr.f32.gmra.mrb[0].mxu0 %v1786
    %v1865 = vpop.f32.mrb[0].mxu0
    %v1866 = vadd.f32 %v1771, %v1865
    %v1867 = vpop.f32.mrb[0].mxu0
    %1868 = vmatprep.mubr.f32.mxu0 0.0
    %1869 = vmatmul.mubr.f32.gmra.mrb[0].mxu0 %v1789
    %v1870 = vpop.f32.mrb[0].mxu0
    %v1871 = vadd.f32 %v1776, %v1870
    %v1872 = vpop.f32.mrb[0].mxu0
    %1873 = vmatprep.mubr.f32.mxu0 0.0
    %1874 = vmatmul.mubr.f32.gmra.mrb[0].mxu0 %v1792
    %v1875 = vpop.f32.mrb[0].mxu0
    %v1876 = vadd.f32 %v1779, %v1875
    %v1877 = vpop.f32.mrb[0].mxu0
    %1878 = vdwg.mxu0
    %v1879 = vlaneseq
    %v1880 = vshrl.u32 %v1879, 7
    %v1881 = vsub.s32 0, %v1880
    %v1882 = vrot.slane %v37, %v1881
    %v1883 = vadd.f32 %v1861, %v1882
    %v1884 = vadd.f32 %v1866, %v1882
    %v1885 = vadd.f32 %v1871, %v1882
    %v1886 = vadd.f32 %v1876, %v1882
    %1887 = vst.msk [vmem:[#allocation2] sm:$0xff] %vm56, %v1883
    %1888 = vst.msk [vmem:[#allocation2 + $0x8] sm:$0xff] %vm56, %v1884
    %1889 = vst.msk [vmem:[#allocation2 + $0x10] sm:$0xff] %vm56, %v1885
    %1890 = vst.msk [vmem:[#allocation2 + $0x18] sm:$0xff] %vm56, %v1886
    // Predicated region
    $region34: #{tpu_custom_call.1} parent=1 // pred_check
      _
    $region35: #{tpu_custom_call.1} parent=1 // pred_check_branch
      %1892 = sbr.rel (0) target = $region37
    $region36: #{tpu_custom_call.1} parent=1 // pred_region
      %s1894 = ssub.s32 512, 512
      %1895 = vsyncadd [#allocation3], %s1894
      %s1896 = sshll.u32 [#allocation2], 4
      %s1897 = int_to_ptr.vmem [resolvable:$true] %s1896
      %1902 = dma.vmem_to_hbm [thread:$0]  %s1897, 512, %s8, [#allocation3], 128, 128, 8
    $region37: #{tpu_custom_call.1} parent=1 // pred_fallthru
      _
    // Predicated region
    $region38: #{tpu_custom_call.1} parent=1 // pred_check
      _
    $region39: #{tpu_custom_call.1} parent=1 // pred_check_branch
      %1904 = sbr.rel (0) target = $region41
    $region40: #{tpu_custom_call.1} parent=1 // pred_region
      %1905 = dma.done [#allocation3], 512
    $region41: #{tpu_custom_call.1} parent=1 // pred_fallthru
      _
    %1906 = vsyncpa [#allocation3], 1

</llo_original>
